<compile_context>
chip_gen: v7x
topology: tpu7x:2x2x1
jax: 0.10.0
libtpu: 0.0.40
codegen_flags: <defaults>
</compile_context>

<pallas_src>
import jax
import jax.numpy as jnp
from jax import lax
from jax.experimental import pallas as pl
from jax.experimental.pallas import tpu as pltpu  # noqa: F401  (kept for TPU-specific tweaks)

# ----------------------------- small config -----------------------------
B = 2               # batch
S = 8               # max_length (seq)
H = 32              # lstm_hiddens
L = 32              # linear_hiddens
POS_DIMS = 8
WLEN_DIMS = 8
SEGPOS = 16         # segpos_num
POS_NUM = 10
WLEN_NUM = 8
WORDLEN_MAX = 6
APP_ID = 3          # self.appID
ACTION_PAD_ID = 0   # self.actionPadID

ENC_DIM = 2 * H
WP_DIMS = WLEN_DIMS + POS_DIMS
IN_DIMS = ENC_DIM + WP_DIMS       # fc input dims (concat order: enc, wordlen, pos)
SB = S * B

# torch assigns -1e100 into a float32 tensor (-> -inf); use a large finite value so
# downstream arithmetic (softmax / max-subtraction) cannot produce NaNs.
NEG_MASK = -1e30


# ------------------------------- kernel ---------------------------------
def decode_fused_kernel(enc_ref,       # (S*B, 2H)   encode_out, rows ordered (t, b)
                        w2_ref,        # (S*B, S*B)  block-diagonal last-word-mean weights
                        wlpos_ref,     # (S*B, 16)   [wordlen_emb, pos_emb] per (t, b) row
                        rowmask_ref,   # (S*B, 1)    f32 validity mask per (t, b) row
                        fcw_enc_ref,   # (2H, L)
                        fcw_wp_ref,    # (16, L)
                        fc_b_ref,      # (1, L)
                        w_ih_ref,      # (L, 4H)
                        w_hh_ref,      # (H, 4H)
                        b_g_ref,       # (1, 4H)     b_ih + b_hh
                        cmb_wh_ref,    # (H, SEGPOS)
                        cmb_we_ref,    # (2H, SEGPOS)
                        cmb_b_ref,     # (1, SEGPOS)
                        out_ref):      # (B, S*SEGPOS) lane-dense output
    f32 = jnp.float32
    enc = enc_ref[...]                                                   # (SB, 2H)

    # last-word mean over the encoder window: one block-diagonal MXU matmul
    last_word = jnp.dot(w2_ref[...], enc, preferred_element_type=f32)    # (SB, 2H)

    # fc(z_in) with split weights, then tanh; z is zeroed at t == 0 (row < B)
    pre = (jnp.dot(last_word, fcw_enc_ref[...], preferred_element_type=f32)
           + jnp.dot(wlpos_ref[...], fcw_wp_ref[...], preferred_element_type=f32)
           + fc_b_ref[...])                                              # (SB, L)
    row = lax.broadcasted_iota(jnp.int32, (SB, 1), 0)                    # row r = t*B + b
    zgate = (row >= B).astype(f32)
    z = jnp.tanh(pre) * zgate                                            # (SB, L)

    # input-side LSTM gates (independent of h/c), batched over all S*B rows
    xg = jnp.dot(z, w_ih_ref[...], preferred_element_type=f32) + b_g_ref[...]   # (SB, 4H)

    # --- sequential LSTMCell recurrence (PyTorch gate order: i, f, g, o) ---
    whh = w_hh_ref[...]                                                  # loaded once, reused every step
    h = jnp.zeros((B, H), f32)
    c = jnp.zeros((B, H), f32)
    h_rows = []
    for t in range(S):                                                   # fully unrolled; h/c live in vregs
        gates = xg[t * B:(t + 1) * B, :] + jnp.dot(h, whh, preferred_element_type=f32)  # (B, 4H)
        sig = jax.nn.sigmoid(gates)                                      # one full-vreg pass (i, f, o)
        i_g = sig[:, 0 * H:1 * H]
        f_g = sig[:, 1 * H:2 * H]
        g_g = jnp.tanh(gates[:, 2 * H:3 * H])                            # tanh only on the g-gate lanes
        o_g = sig[:, 3 * H:4 * H]
        c = f_g * c + i_g * g_g
        h = o_g * jnp.tanh(c)
        h_rows.append(h)
    h_flat = jnp.concatenate(h_rows, axis=0)                             # (SB, H)

    # combine([h, encode_out[t]]) with split weights
    logits = (jnp.dot(h_flat, cmb_wh_ref[...], preferred_element_type=f32)
              + jnp.dot(enc, cmb_we_ref[...], preferred_element_type=f32)
              + cmb_b_ref[...])                                          # (SB, SEGPOS)

    # column masking: actionPadID at every step, appID only at t == 0
    col = lax.broadcasted_iota(jnp.int32, (SB, SEGPOS), 1)
    colmask = (col == ACTION_PAD_ID) | ((row < B) & (col == APP_ID))
    logits = jnp.where(colmask, NEG_MASK, logits)

    # masked_scatter_ into zeros with a full-row mask (lengths sorted descending)
    logits = jnp.where(rowmask_ref[...] > 0.0, logits, 0.0)

    # lane-dense output: out[b, t*SEGPOS + k] = logits[t*B + b, k]  -> (B, 128), one dense store
    out_ref[...] = jnp.concatenate(
        [logits[t * B:(t + 1) * B, :] for t in range(S)], axis=1)


# ------------------------------ wrapper ----------------------------------
@jax.jit
def decode_forward(encode_out,       # (B, S, 2H)  float32
                   mask,             # (B, S)      float32 (1.0 for valid steps)
                   w2,               # (S*B, S*B)  block-diagonal last-word-mean weights
                   wlpos_flat,       # (S*B, 16)   [wordlen_emb, pos_emb] rows ordered (t, b)
                   params):          # kernel-ready, pre-split weights (see make_params)
    (fcw_enc, fcw_wp, fc_b, w_ih, w_hh, b_gates, cmb_wh, cmb_we, cmb_b) = params

    # layout plumbing only — all compute happens inside the single fused kernel
    enc_flat = jnp.transpose(encode_out, (1, 0, 2)).reshape(SB, ENC_DIM)    # rows ordered (t, b)
    rowmask = jnp.transpose(mask, (1, 0)).reshape(SB, 1)

    out_flat = pl.pallas_call(
        decode_fused_kernel,
        out_shape=jax.ShapeDtypeStruct((B, S * SEGPOS), jnp.float32),
    )(enc_flat, w2, wlpos_flat, rowmask,
      fcw_enc, fcw_wp, fc_b, w_ih, w_hh, b_gates, cmb_wh, cmb_we, cmb_b)

    # output_total = cat(...).transpose(0, 1)  -> (batch, seq, segpos)
    return out_flat.reshape(B, S, SEGPOS)


# ----------------------- deterministic parameter init --------------------
def make_params(key):
    ks = jax.random.split(key, 10)
    scale = 0.1
    pos_table = jax.random.uniform(ks[0], (POS_NUM, POS_DIMS), jnp.float32, -scale, scale)
    wlen_table = jax.random.uniform(ks[1], (WLEN_NUM, WLEN_DIMS), jnp.float32, -scale, scale)
    fc_w = jax.random.uniform(ks[2], (IN_DIMS, L), jnp.float32, -scale, scale)      # (in, out)
    fc_b = jax.random.uniform(ks[3], (1, L), jnp.float32, -scale, scale)
    w_ih = jax.random.uniform(ks[4], (L, 4 * H), jnp.float32, -scale, scale)        # transposed vs torch
    w_hh = jax.random.uniform(ks[5], (H, 4 * H), jnp.float32, -scale, scale)
    b_ih = jax.random.uniform(ks[6], (1, 4 * H), jnp.float32, -scale, scale)
    b_hh = jax.random.uniform(ks[7], (1, 4 * H), jnp.float32, -scale, scale)
    cmb_w = jax.random.uniform(ks[8], (3 * H, SEGPOS), jnp.float32, -scale, scale)
    cmb_b = jax.random.uniform(ks[9], (1, SEGPOS), jnp.float32, -scale, scale)
    # pre-split / pre-combine once (outside the jitted forward) so the pallas_call
    # is the only non-trivial HLO at decode time
    params = (fc_w[:ENC_DIM],                  # (2H, L)   enc rows of fc
              fc_w[ENC_DIM:],                  # (16, L)   [wordlen, pos] rows of fc
              fc_b,
              w_ih, w_hh,
              b_ih + b_hh,                     # combined gate bias
              cmb_w[:H],                       # (H, SEGPOS)   h rows of combine
              cmb_w[H:],                       # (2H, SEGPOS)  enc rows of combine
              cmb_b)
    return pos_table, wlen_table, params


if __name__ == "__main__":
    key = jax.random.PRNGKey(0)
    k_enc, k_state, k_params = jax.random.split(key, 3)

    pos_table, wlen_table, params = make_params(k_params)

    # inputs
    encode_out = jax.random.normal(k_enc, (B, S, ENC_DIM), jnp.float32)
    lengths = jnp.array([S, S - 2], dtype=jnp.int32)          # sorted descending (masked_scatter_ equivalence)
    t_idx = jnp.arange(S, dtype=jnp.int32)
    mask = (t_idx[None, :] < lengths[:, None]).astype(jnp.float32)   # (B, S)

    # synthetic gold-driven decode state (pos ids / last-word lengths per step)
    ks1, ks2 = jax.random.split(k_state)
    pos_idx = jax.random.randint(ks1, (S, B), 0, POS_NUM)             # (S, B)
    raw_wlen = jax.random.randint(ks2, (S, B), 1, WORDLEN_MAX + 1)    # (S, B) in [1, wordlen_max]
    # the last word can only span characters already seen: clamp to <= t
    wl = jnp.minimum(raw_wlen, jnp.maximum(t_idx[:, None], 1))        # (S, B)
    wlen_idx = jnp.clip(wl, 0, WLEN_NUM - 1)

    posemb_steps = pos_table[pos_idx]                                 # (S, B, POS_DIMS)
    wlemb_steps = wlen_table[wlen_idx]                                # (S, B, WLEN_DIMS)
    # concat order matches fc_w rows: [... enc ..., wordlen, pos]
    wlpos_flat = jnp.concatenate([wlemb_steps, posemb_steps], axis=-1).reshape(SB, WP_DIMS)

    # window weights for mean(encode_out[b, t-wl : t]) (zero at t == 0), packed as a
    # block-diagonal (S*B, S*B) matrix so the kernel evaluates it as one MXU matmul.
    s_idx = jnp.arange(S, dtype=jnp.int32)
    in_win = ((s_idx[None, None, :] >= (t_idx[:, None, None] - wl[:, :, None]))
              & (s_idx[None, None, :] < t_idx[:, None, None]))        # (S, B, S)
    win_w = in_win.astype(jnp.float32) / wl[:, :, None].astype(jnp.float32)
    win_w = jnp.where(t_idx[:, None, None] == 0, 0.0, win_w)
    w2 = (win_w[:, :, :, None]
          * jnp.eye(B, dtype=jnp.float32)[None, :, None, :]).reshape(SB, SB)

    out = decode_forward(encode_out, mask, w2, wlpos_flat, params)
    out = jax.block_until_ready(out)

    assert out.shape == (B, S, SEGPOS), out.shape
    assert out.dtype == jnp.float32
    print("KERNEL_OK")
</pallas_src>

<mosaic_0001>
module attributes {stable_mosaic.version = 11 : i64} {
  func.func @decode_fused_kernel(%arg0: memref<16x64xf32, #tpu.memory_space<vmem>>, %arg1: memref<16x16xf32, #tpu.memory_space<vmem>>, %arg2: memref<16x16xf32, #tpu.memory_space<vmem>>, %arg3: memref<16x1xf32, #tpu.memory_space<vmem>>, %arg4: memref<64x32xf32, #tpu.memory_space<vmem>>, %arg5: memref<16x32xf32, #tpu.memory_space<vmem>>, %arg6: memref<1x32xf32, #tpu.memory_space<vmem>>, %arg7: memref<32x128xf32, #tpu.memory_space<vmem>>, %arg8: memref<32x128xf32, #tpu.memory_space<vmem>>, %arg9: memref<1x128xf32, #tpu.memory_space<vmem>>, %arg10: memref<32x16xf32, #tpu.memory_space<vmem>>, %arg11: memref<64x16xf32, #tpu.memory_space<vmem>>, %arg12: memref<1x16xf32, #tpu.memory_space<vmem>>, %arg13: memref<2x128xf32, #tpu.memory_space<vmem>>) attributes {dimension_semantics = [], scalar_prefetch = 0 : i64, scratch_operands = 0 : i64, tpu.core_type = #tpu.core_type<tc>} {
    %c0 = arith.constant 0 : index
    %c0_0 = arith.constant 0 : index
    %0 = vector.load %arg0[%c0, %c0_0] : memref<16x64xf32, #tpu.memory_space<vmem>>, vector<16x64xf32>
    %c0_1 = arith.constant 0 : index
    %c0_2 = arith.constant 0 : index
    %1 = vector.load %arg1[%c0_1, %c0_2] : memref<16x16xf32, #tpu.memory_space<vmem>>, vector<16x16xf32>
    %cst = arith.constant dense<0.000000e+00> : vector<16x64xf32>
    %2 = tpu.matmul %1, %0, %cst {dimension_numbers = #tpu.dot_dimension_numbers<[1], [0], [0], [1], [0, 0, 1, 1], [], []>} : vector<16x16xf32>, vector<16x64xf32>, vector<16x64xf32> -> vector<16x64xf32>
    %c0_3 = arith.constant 0 : index
    %c0_4 = arith.constant 0 : index
    %3 = vector.load %arg4[%c0_3, %c0_4] : memref<64x32xf32, #tpu.memory_space<vmem>>, vector<64x32xf32>
    %cst_5 = arith.constant dense<0.000000e+00> : vector<16x32xf32>
    %4 = tpu.matmul %2, %3, %cst_5 {dimension_numbers = #tpu.dot_dimension_numbers<[1], [0], [0], [1], [0, 0, 1, 1], [], []>} : vector<16x64xf32>, vector<64x32xf32>, vector<16x32xf32> -> vector<16x32xf32>
    %c0_6 = arith.constant 0 : index
    %c0_7 = arith.constant 0 : index
    %5 = vector.load %arg2[%c0_6, %c0_7] : memref<16x16xf32, #tpu.memory_space<vmem>>, vector<16x16xf32>
    %c0_8 = arith.constant 0 : index
    %c0_9 = arith.constant 0 : index
    %6 = vector.load %arg5[%c0_8, %c0_9] : memref<16x32xf32, #tpu.memory_space<vmem>>, vector<16x32xf32>
    %cst_10 = arith.constant dense<0.000000e+00> : vector<16x32xf32>
    %7 = tpu.matmul %5, %6, %cst_10 {dimension_numbers = #tpu.dot_dimension_numbers<[1], [0], [0], [1], [0, 0, 1, 1], [], []>} : vector<16x16xf32>, vector<16x32xf32>, vector<16x32xf32> -> vector<16x32xf32>
    %8 = arith.addf %4, %7 : vector<16x32xf32>
    %c0_11 = arith.constant 0 : index
    %c0_12 = arith.constant 0 : index
    %9 = vector.load %arg6[%c0_11, %c0_12] : memref<1x32xf32, #tpu.memory_space<vmem>>, vector<1x32xf32>
    %10 = vector.broadcast %9 : vector<1x32xf32> to vector<16x32xf32>
    %11 = arith.addf %8, %10 : vector<16x32xf32>
    %12 = tpu.iota {dimensions = array<i32: 0>} : vector<16x1xi32>
    %c2_i32 = arith.constant 2 : i32
    %13 = vector.broadcast %c2_i32 : i32 to vector<16x1xi32>
    %14 = arith.cmpi sge, %12, %13 : vector<16x1xi32>
    %15 = arith.extui %14 : vector<16x1xi1> to vector<16x1xi32>
    %16 = arith.sitofp %15 : vector<16x1xi32> to vector<16x1xf32>
    %17 = math.tanh %11 : vector<16x32xf32>
    %18 = vector.broadcast %16 : vector<16x1xf32> to vector<16x32xf32>
    %19 = arith.mulf %17, %18 : vector<16x32xf32>
    %c0_13 = arith.constant 0 : index
    %c0_14 = arith.constant 0 : index
    %20 = vector.load %arg7[%c0_13, %c0_14] : memref<32x128xf32, #tpu.memory_space<vmem>>, vector<32x128xf32>
    %cst_15 = arith.constant dense<0.000000e+00> : vector<16x128xf32>
    %21 = tpu.matmul %19, %20, %cst_15 {dimension_numbers = #tpu.dot_dimension_numbers<[1], [0], [0], [1], [0, 0, 1, 1], [], []>} : vector<16x32xf32>, vector<32x128xf32>, vector<16x128xf32> -> vector<16x128xf32>
    %c0_16 = arith.constant 0 : index
    %c0_17 = arith.constant 0 : index
    %22 = vector.load %arg9[%c0_16, %c0_17] : memref<1x128xf32, #tpu.memory_space<vmem>>, vector<1x128xf32>
    %23 = vector.broadcast %22 : vector<1x128xf32> to vector<16x128xf32>
    %24 = arith.addf %21, %23 : vector<16x128xf32>
    %c0_18 = arith.constant 0 : index
    %c0_19 = arith.constant 0 : index
    %25 = vector.load %arg8[%c0_18, %c0_19] : memref<32x128xf32, #tpu.memory_space<vmem>>, vector<32x128xf32>
    %cst_20 = arith.constant 0.000000e+00 : f32
    %26 = vector.broadcast %cst_20 : f32 to vector<2x32xf32>
    %cst_21 = arith.constant 0.000000e+00 : f32
    %27 = vector.broadcast %cst_21 : f32 to vector<2x32xf32>
    %28 = vector.extract_strided_slice %24 {offsets = [0, 0], sizes = [2, 128], strides = [1, 1]} : vector<16x128xf32> to vector<2x128xf32>
    %cst_22 = arith.constant dense<0.000000e+00> : vector<2x128xf32>
    %29 = tpu.matmul %26, %25, %cst_22 {dimension_numbers = #tpu.dot_dimension_numbers<[1], [0], [0], [1], [0, 0, 1, 1], [], []>} : vector<2x32xf32>, vector<32x128xf32>, vector<2x128xf32> -> vector<2x128xf32>
    %30 = arith.addf %28, %29 : vector<2x128xf32>
    %31 = arith.negf %30 : vector<2x128xf32>
    %32 = math.exp %31 : vector<2x128xf32>
    %cst_23 = arith.constant 1.000000e+00 : f32
    %33 = vector.broadcast %cst_23 : f32 to vector<2x128xf32>
    %34 = arith.addf %33, %32 : vector<2x128xf32>
    %35 = arith.divf %33, %34 : vector<2x128xf32>
    %36 = vector.extract_strided_slice %35 {offsets = [0, 0], sizes = [2, 32], strides = [1, 1]} : vector<2x128xf32> to vector<2x32xf32>
    %37 = vector.extract_strided_slice %35 {offsets = [0, 32], sizes = [2, 32], strides = [1, 1]} : vector<2x128xf32> to vector<2x32xf32>
    %38 = vector.extract_strided_slice %30 {offsets = [0, 64], sizes = [2, 32], strides = [1, 1]} : vector<2x128xf32> to vector<2x32xf32>
    %39 = math.tanh %38 : vector<2x32xf32>
    %40 = vector.extract_strided_slice %35 {offsets = [0, 96], sizes = [2, 32], strides = [1, 1]} : vector<2x128xf32> to vector<2x32xf32>
    %41 = arith.mulf %37, %27 : vector<2x32xf32>
    %42 = arith.mulf %36, %39 : vector<2x32xf32>
    %43 = arith.addf %41, %42 : vector<2x32xf32>
    %44 = math.tanh %43 : vector<2x32xf32>
    %45 = arith.mulf %40, %44 : vector<2x32xf32>
    %46 = vector.extract_strided_slice %24 {offsets = [2, 0], sizes = [2, 128], strides = [1, 1]} : vector<16x128xf32> to vector<2x128xf32>
    %cst_24 = arith.constant dense<0.000000e+00> : vector<2x128xf32>
    %47 = tpu.matmul %45, %25, %cst_24 {dimension_numbers = #tpu.dot_dimension_numbers<[1], [0], [0], [1], [0, 0, 1, 1], [], []>} : vector<2x32xf32>, vector<32x128xf32>, vector<2x128xf32> -> vector<2x128xf32>
    %48 = arith.addf %46, %47 : vector<2x128xf32>
    %49 = arith.negf %48 : vector<2x128xf32>
    %50 = math.exp %49 : vector<2x128xf32>
    %cst_25 = arith.constant 1.000000e+00 : f32
    %51 = vector.broadcast %cst_25 : f32 to vector<2x128xf32>
    %52 = arith.addf %51, %50 : vector<2x128xf32>
    %53 = arith.divf %51, %52 : vector<2x128xf32>
    %54 = vector.extract_strided_slice %53 {offsets = [0, 0], sizes = [2, 32], strides = [1, 1]} : vector<2x128xf32> to vector<2x32xf32>
    %55 = vector.extract_strided_slice %53 {offsets = [0, 32], sizes = [2, 32], strides = [1, 1]} : vector<2x128xf32> to vector<2x32xf32>
    %56 = vector.extract_strided_slice %48 {offsets = [0, 64], sizes = [2, 32], strides = [1, 1]} : vector<2x128xf32> to vector<2x32xf32>
    %57 = math.tanh %56 : vector<2x32xf32>
    %58 = vector.extract_strided_slice %53 {offsets = [0, 96], sizes = [2, 32], strides = [1, 1]} : vector<2x128xf32> to vector<2x32xf32>
    %59 = arith.mulf %55, %43 : vector<2x32xf32>
    %60 = arith.mulf %54, %57 : vector<2x32xf32>
    %61 = arith.addf %59, %60 : vector<2x32xf32>
    %62 = math.tanh %61 : vector<2x32xf32>
    %63 = arith.mulf %58, %62 : vector<2x32xf32>
    %64 = vector.extract_strided_slice %24 {offsets = [4, 0], sizes = [2, 128], strides = [1, 1]} : vector<16x128xf32> to vector<2x128xf32>
    %cst_26 = arith.constant dense<0.000000e+00> : vector<2x128xf32>
    %65 = tpu.matmul %63, %25, %cst_26 {dimension_numbers = #tpu.dot_dimension_numbers<[1], [0], [0], [1], [0, 0, 1, 1], [], []>} : vector<2x32xf32>, vector<32x128xf32>, vector<2x128xf32> -> vector<2x128xf32>
    %66 = arith.addf %64, %65 : vector<2x128xf32>
    %67 = arith.negf %66 : vector<2x128xf32>
    %68 = math.exp %67 : vector<2x128xf32>
    %cst_27 = arith.constant 1.000000e+00 : f32
    %69 = vector.broadcast %cst_27 : f32 to vector<2x128xf32>
    %70 = arith.addf %69, %68 : vector<2x128xf32>
    %71 = arith.divf %69, %70 : vector<2x128xf32>
    %72 = vector.extract_strided_slice %71 {offsets = [0, 0], sizes = [2, 32], strides = [1, 1]} : vector<2x128xf32> to vector<2x32xf32>
    %73 = vector.extract_strided_slice %71 {offsets = [0, 32], sizes = [2, 32], strides = [1, 1]} : vector<2x128xf32> to vector<2x32xf32>
    %74 = vector.extract_strided_slice %66 {offsets = [0, 64], sizes = [2, 32], strides = [1, 1]} : vector<2x128xf32> to vector<2x32xf32>
    %75 = math.tanh %74 : vector<2x32xf32>
    %76 = vector.extract_strided_slice %71 {offsets = [0, 96], sizes = [2, 32], strides = [1, 1]} : vector<2x128xf32> to vector<2x32xf32>
    %77 = arith.mulf %73, %61 : vector<2x32xf32>
    %78 = arith.mulf %72, %75 : vector<2x32xf32>
    %79 = arith.addf %77, %78 : vector<2x32xf32>
    %80 = math.tanh %79 : vector<2x32xf32>
    %81 = arith.mulf %76, %80 : vector<2x32xf32>
    %82 = vector.extract_strided_slice %24 {offsets = [6, 0], sizes = [2, 128], strides = [1, 1]} : vector<16x128xf32> to vector<2x128xf32>
    %cst_28 = arith.constant dense<0.000000e+00> : vector<2x128xf32>
    %83 = tpu.matmul %81, %25, %cst_28 {dimension_numbers = #tpu.dot_dimension_numbers<[1], [0], [0], [1], [0, 0, 1, 1], [], []>} : vector<2x32xf32>, vector<32x128xf32>, vector<2x128xf32> -> vector<2x128xf32>
    %84 = arith.addf %82, %83 : vector<2x128xf32>
    %85 = arith.negf %84 : vector<2x128xf32>
    %86 = math.exp %85 : vector<2x128xf32>
    %cst_29 = arith.constant 1.000000e+00 : f32
    %87 = vector.broadcast %cst_29 : f32 to vector<2x128xf32>
    %88 = arith.addf %87, %86 : vector<2x128xf32>
    %89 = arith.divf %87, %88 : vector<2x128xf32>
    %90 = vector.extract_strided_slice %89 {offsets = [0, 0], sizes = [2, 32], strides = [1, 1]} : vector<2x128xf32> to vector<2x32xf32>
    %91 = vector.extract_strided_slice %89 {offsets = [0, 32], sizes = [2, 32], strides = [1, 1]} : vector<2x128xf32> to vector<2x32xf32>
    %92 = vector.extract_strided_slice %84 {offsets = [0, 64], sizes = [2, 32], strides = [1, 1]} : vector<2x128xf32> to vector<2x32xf32>
    %93 = math.tanh %92 : vector<2x32xf32>
    %94 = vector.extract_strided_slice %89 {offsets = [0, 96], sizes = [2, 32], strides = [1, 1]} : vector<2x128xf32> to vector<2x32xf32>
    %95 = arith.mulf %91, %79 : vector<2x32xf32>
    %96 = arith.mulf %90, %93 : vector<2x32xf32>
    %97 = arith.addf %95, %96 : vector<2x32xf32>
    %98 = math.tanh %97 : vector<2x32xf32>
    %99 = arith.mulf %94, %98 : vector<2x32xf32>
    %100 = vector.extract_strided_slice %24 {offsets = [8, 0], sizes = [2, 128], strides = [1, 1]} : vector<16x128xf32> to vector<2x128xf32>
    %cst_30 = arith.constant dense<0.000000e+00> : vector<2x128xf32>
    %101 = tpu.matmul %99, %25, %cst_30 {dimension_numbers = #tpu.dot_dimension_numbers<[1], [0], [0], [1], [0, 0, 1, 1], [], []>} : vector<2x32xf32>, vector<32x128xf32>, vector<2x128xf32> -> vector<2x128xf32>
    %102 = arith.addf %100, %101 : vector<2x128xf32>
    %103 = arith.negf %102 : vector<2x128xf32>
    %104 = math.exp %103 : vector<2x128xf32>
    %cst_31 = arith.constant 1.000000e+00 : f32
    %105 = vector.broadcast %cst_31 : f32 to vector<2x128xf32>
    %106 = arith.addf %105, %104 : vector<2x128xf32>
    %107 = arith.divf %105, %106 : vector<2x128xf32>
    %108 = vector.extract_strided_slice %107 {offsets = [0, 0], sizes = [2, 32], strides = [1, 1]} : vector<2x128xf32> to vector<2x32xf32>
    %109 = vector.extract_strided_slice %107 {offsets = [0, 32], sizes = [2, 32], strides = [1, 1]} : vector<2x128xf32> to vector<2x32xf32>
    %110 = vector.extract_strided_slice %102 {offsets = [0, 64], sizes = [2, 32], strides = [1, 1]} : vector<2x128xf32> to vector<2x32xf32>
    %111 = math.tanh %110 : vector<2x32xf32>
    %112 = vector.extract_strided_slice %107 {offsets = [0, 96], sizes = [2, 32], strides = [1, 1]} : vector<2x128xf32> to vector<2x32xf32>
    %113 = arith.mulf %109, %97 : vector<2x32xf32>
    %114 = arith.mulf %108, %111 : vector<2x32xf32>
    %115 = arith.addf %113, %114 : vector<2x32xf32>
    %116 = math.tanh %115 : vector<2x32xf32>
    %117 = arith.mulf %112, %116 : vector<2x32xf32>
    %118 = vector.extract_strided_slice %24 {offsets = [10, 0], sizes = [2, 128], strides = [1, 1]} : vector<16x128xf32> to vector<2x128xf32>
    %cst_32 = arith.constant dense<0.000000e+00> : vector<2x128xf32>
    %119 = tpu.matmul %117, %25, %cst_32 {dimension_numbers = #tpu.dot_dimension_numbers<[1], [0], [0], [1], [0, 0, 1, 1], [], []>} : vector<2x32xf32>, vector<32x128xf32>, vector<2x128xf32> -> vector<2x128xf32>
    %120 = arith.addf %118, %119 : vector<2x128xf32>
    %121 = arith.negf %120 : vector<2x128xf32>
    %122 = math.exp %121 : vector<2x128xf32>
    %cst_33 = arith.constant 1.000000e+00 : f32
    %123 = vector.broadcast %cst_33 : f32 to vector<2x128xf32>
    %124 = arith.addf %123, %122 : vector<2x128xf32>
    %125 = arith.divf %123, %124 : vector<2x128xf32>
    %126 = vector.extract_strided_slice %125 {offsets = [0, 0], sizes = [2, 32], strides = [1, 1]} : vector<2x128xf32> to vector<2x32xf32>
    %127 = vector.extract_strided_slice %125 {offsets = [0, 32], sizes = [2, 32], strides = [1, 1]} : vector<2x128xf32> to vector<2x32xf32>
    %128 = vector.extract_strided_slice %120 {offsets = [0, 64], sizes = [2, 32], strides = [1, 1]} : vector<2x128xf32> to vector<2x32xf32>
    %129 = math.tanh %128 : vector<2x32xf32>
    %130 = vector.extract_strided_slice %125 {offsets = [0, 96], sizes = [2, 32], strides = [1, 1]} : vector<2x128xf32> to vector<2x32xf32>
    %131 = arith.mulf %127, %115 : vector<2x32xf32>
    %132 = arith.mulf %126, %129 : vector<2x32xf32>
    %133 = arith.addf %131, %132 : vector<2x32xf32>
    %134 = math.tanh %133 : vector<2x32xf32>
    %135 = arith.mulf %130, %134 : vector<2x32xf32>
    %136 = vector.extract_strided_slice %24 {offsets = [12, 0], sizes = [2, 128], strides = [1, 1]} : vector<16x128xf32> to vector<2x128xf32>
    %cst_34 = arith.constant dense<0.000000e+00> : vector<2x128xf32>
    %137 = tpu.matmul %135, %25, %cst_34 {dimension_numbers = #tpu.dot_dimension_numbers<[1], [0], [0], [1], [0, 0, 1, 1], [], []>} : vector<2x32xf32>, vector<32x128xf32>, vector<2x128xf32> -> vector<2x128xf32>
    %138 = arith.addf %136, %137 : vector<2x128xf32>
    %139 = arith.negf %138 : vector<2x128xf32>
    %140 = math.exp %139 : vector<2x128xf32>
    %cst_35 = arith.constant 1.000000e+00 : f32
    %141 = vector.broadcast %cst_35 : f32 to vector<2x128xf32>
    %142 = arith.addf %141, %140 : vector<2x128xf32>
    %143 = arith.divf %141, %142 : vector<2x128xf32>
    %144 = vector.extract_strided_slice %143 {offsets = [0, 0], sizes = [2, 32], strides = [1, 1]} : vector<2x128xf32> to vector<2x32xf32>
    %145 = vector.extract_strided_slice %143 {offsets = [0, 32], sizes = [2, 32], strides = [1, 1]} : vector<2x128xf32> to vector<2x32xf32>
    %146 = vector.extract_strided_slice %138 {offsets = [0, 64], sizes = [2, 32], strides = [1, 1]} : vector<2x128xf32> to vector<2x32xf32>
    %147 = math.tanh %146 : vector<2x32xf32>
    %148 = vector.extract_strided_slice %143 {offsets = [0, 96], sizes = [2, 32], strides = [1, 1]} : vector<2x128xf32> to vector<2x32xf32>
    %149 = arith.mulf %145, %133 : vector<2x32xf32>
    %150 = arith.mulf %144, %147 : vector<2x32xf32>
    %151 = arith.addf %149, %150 : vector<2x32xf32>
    %152 = math.tanh %151 : vector<2x32xf32>
    %153 = arith.mulf %148, %152 : vector<2x32xf32>
    %154 = vector.extract_strided_slice %24 {offsets = [14, 0], sizes = [2, 128], strides = [1, 1]} : vector<16x128xf32> to vector<2x128xf32>
    %cst_36 = arith.constant dense<0.000000e+00> : vector<2x128xf32>
    %155 = tpu.matmul %153, %25, %cst_36 {dimension_numbers = #tpu.dot_dimension_numbers<[1], [0], [0], [1], [0, 0, 1, 1], [], []>} : vector<2x32xf32>, vector<32x128xf32>, vector<2x128xf32> -> vector<2x128xf32>
    %156 = arith.addf %154, %155 : vector<2x128xf32>
    %157 = arith.negf %156 : vector<2x128xf32>
    %158 = math.exp %157 : vector<2x128xf32>
    %cst_37 = arith.constant 1.000000e+00 : f32
    %159 = vector.broadcast %cst_37 : f32 to vector<2x128xf32>
    %160 = arith.addf %159, %158 : vector<2x128xf32>
    %161 = arith.divf %159, %160 : vector<2x128xf32>
    %162 = vector.extract_strided_slice %161 {offsets = [0, 0], sizes = [2, 32], strides = [1, 1]} : vector<2x128xf32> to vector<2x32xf32>
    %163 = vector.extract_strided_slice %161 {offsets = [0, 32], sizes = [2, 32], strides = [1, 1]} : vector<2x128xf32> to vector<2x32xf32>
    %164 = vector.extract_strided_slice %156 {offsets = [0, 64], sizes = [2, 32], strides = [1, 1]} : vector<2x128xf32> to vector<2x32xf32>
    %165 = math.tanh %164 : vector<2x32xf32>
    %166 = vector.extract_strided_slice %161 {offsets = [0, 96], sizes = [2, 32], strides = [1, 1]} : vector<2x128xf32> to vector<2x32xf32>
    %167 = arith.mulf %163, %151 : vector<2x32xf32>
    %168 = arith.mulf %162, %165 : vector<2x32xf32>
    %169 = arith.addf %167, %168 : vector<2x32xf32>
    %170 = math.tanh %169 : vector<2x32xf32>
    %171 = arith.mulf %166, %170 : vector<2x32xf32>
    %172 = tpu.concatenate %45, %63, %81, %99, %117, %135, %153, %171 in 0 : vector<2x32xf32>, vector<2x32xf32>, vector<2x32xf32>, vector<2x32xf32>, vector<2x32xf32>, vector<2x32xf32>, vector<2x32xf32>, vector<2x32xf32> -> vector<16x32xf32>
    %c0_38 = arith.constant 0 : index
    %c0_39 = arith.constant 0 : index
    %173 = vector.load %arg10[%c0_38, %c0_39] : memref<32x16xf32, #tpu.memory_space<vmem>>, vector<32x16xf32>
    %cst_40 = arith.constant dense<0.000000e+00> : vector<16x16xf32>
    %174 = tpu.matmul %172, %173, %cst_40 {dimension_numbers = #tpu.dot_dimension_numbers<[1], [0], [0], [1], [0, 0, 1, 1], [], []>} : vector<16x32xf32>, vector<32x16xf32>, vector<16x16xf32> -> vector<16x16xf32>
    %c0_41 = arith.constant 0 : index
    %c0_42 = arith.constant 0 : index
    %175 = vector.load %arg11[%c0_41, %c0_42] : memref<64x16xf32, #tpu.memory_space<vmem>>, vector<64x16xf32>
    %cst_43 = arith.constant dense<0.000000e+00> : vector<16x16xf32>
    %176 = tpu.matmul %0, %175, %cst_43 {dimension_numbers = #tpu.dot_dimension_numbers<[1], [0], [0], [1], [0, 0, 1, 1], [], []>} : vector<16x64xf32>, vector<64x16xf32>, vector<16x16xf32> -> vector<16x16xf32>
    %177 = arith.addf %174, %176 : vector<16x16xf32>
    %c0_44 = arith.constant 0 : index
    %c0_45 = arith.constant 0 : index
    %178 = vector.load %arg12[%c0_44, %c0_45] : memref<1x16xf32, #tpu.memory_space<vmem>>, vector<1x16xf32>
    %179 = vector.broadcast %178 : vector<1x16xf32> to vector<16x16xf32>
    %180 = arith.addf %177, %179 : vector<16x16xf32>
    %181 = tpu.iota {dimensions = array<i32: 1>} : vector<16x16xi32>
    %c0_i32 = arith.constant 0 : i32
    %182 = vector.broadcast %c0_i32 : i32 to vector<16x16xi32>
    %183 = arith.cmpi eq, %181, %182 : vector<16x16xi32>
    %c2_i32_46 = arith.constant 2 : i32
    %184 = vector.broadcast %c2_i32_46 : i32 to vector<16x1xi32>
    %185 = arith.cmpi slt, %12, %184 : vector<16x1xi32>
    %c3_i32 = arith.constant 3 : i32
    %186 = vector.broadcast %c3_i32 : i32 to vector<16x16xi32>
    %187 = arith.cmpi eq, %181, %186 : vector<16x16xi32>
    %188 = vector.broadcast %185 : vector<16x1xi1> to vector<16x16xi1>
    %189 = arith.andi %188, %187 : vector<16x16xi1>
    %190 = arith.ori %183, %189 : vector<16x16xi1>
    %cst_47 = arith.constant -1.000000e+30 : f32
    %191 = vector.broadcast %cst_47 : f32 to vector<16x16xf32>
    %192 = arith.select %190, %191, %180 : vector<16x16xi1>, vector<16x16xf32>
    %c0_48 = arith.constant 0 : index
    %c0_49 = arith.constant 0 : index
    %193 = vector.load %arg3[%c0_48, %c0_49] : memref<16x1xf32, #tpu.memory_space<vmem>>, vector<16x1xf32>
    %cst_50 = arith.constant 0.000000e+00 : f32
    %194 = vector.broadcast %cst_50 : f32 to vector<16x1xf32>
    %195 = arith.cmpf ogt, %193, %194 : vector<16x1xf32>
    %cst_51 = arith.constant 0.000000e+00 : f32
    %196 = vector.shape_cast %195 : vector<16x1xi1> to vector<16x1xi1>
    %197 = vector.broadcast %196 : vector<16x1xi1> to vector<16x16xi1>
    %198 = vector.broadcast %cst_51 : f32 to vector<16x16xf32>
    %199 = arith.select %197, %192, %198 : vector<16x16xi1>, vector<16x16xf32>
    %200 = vector.extract_strided_slice %199 {offsets = [0, 0], sizes = [2, 16], strides = [1, 1]} : vector<16x16xf32> to vector<2x16xf32>
    %201 = vector.extract_strided_slice %199 {offsets = [2, 0], sizes = [2, 16], strides = [1, 1]} : vector<16x16xf32> to vector<2x16xf32>
    %202 = vector.extract_strided_slice %199 {offsets = [4, 0], sizes = [2, 16], strides = [1, 1]} : vector<16x16xf32> to vector<2x16xf32>
    %203 = vector.extract_strided_slice %199 {offsets = [6, 0], sizes = [2, 16], strides = [1, 1]} : vector<16x16xf32> to vector<2x16xf32>
    %204 = vector.extract_strided_slice %199 {offsets = [8, 0], sizes = [2, 16], strides = [1, 1]} : vector<16x16xf32> to vector<2x16xf32>
    %205 = vector.extract_strided_slice %199 {offsets = [10, 0], sizes = [2, 16], strides = [1, 1]} : vector<16x16xf32> to vector<2x16xf32>
    %206 = vector.extract_strided_slice %199 {offsets = [12, 0], sizes = [2, 16], strides = [1, 1]} : vector<16x16xf32> to vector<2x16xf32>
    %207 = vector.extract_strided_slice %199 {offsets = [14, 0], sizes = [2, 16], strides = [1, 1]} : vector<16x16xf32> to vector<2x16xf32>
    %208 = tpu.concatenate %200, %201, %202, %203, %204, %205, %206, %207 in 1 : vector<2x16xf32>, vector<2x16xf32>, vector<2x16xf32>, vector<2x16xf32>, vector<2x16xf32>, vector<2x16xf32>, vector<2x16xf32>, vector<2x16xf32> -> vector<2x128xf32>
    %c0_52 = arith.constant 0 : index
    %c0_53 = arith.constant 0 : index
    %209 = vector.load %arg13[%c0_52, %c0_53] : memref<2x128xf32, #tpu.memory_space<vmem>>, vector<2x128xf32>
    tpu.vector_store %arg13[%c0_52, %c0_53], %208 {strides = array<i32>} : memref<2x128xf32, #tpu.memory_space<vmem>>, vector<2x128xf32>,
    return
  }
}

</mosaic_0001>

<llo_original>
// kernel: decode_forward.1
$region0: #{decode_forward.1}
  #allocation0 [shape = 'u32[]', space=smem, size = 0x4, offset = 0x4, fixed_abs, tag = 'smem constant byte address 0x4 - core index']
  #allocation1 [shape = 'u32[144,128]{1,0:T(1,128)}', space=vmem, size = 0x12000, scoped, tag = 'internal scratch']
  %s0 = inlined_call_operand.vmem [shape: f32[16,64], index: 0, kind: input, shape index: {}]
  %s1 = inlined_call_operand.vmem [shape: f32[16,16], index: 1, kind: input, shape index: {}]
  %s2 = inlined_call_operand.vmem [shape: f32[16,16], index: 2, kind: input, shape index: {}]
  %s3 = inlined_call_operand.vmem [shape: f32[16,1], index: 3, kind: input, shape index: {}]
  %s4 = inlined_call_operand.vmem [shape: f32[64,32], index: 4, kind: input, shape index: {}]
  %s5 = inlined_call_operand.vmem [shape: f32[16,32], index: 5, kind: input, shape index: {}]
  %s6 = inlined_call_operand.vmem [shape: f32[1,32], index: 6, kind: input, shape index: {}]
  %s7 = inlined_call_operand.vmem [shape: f32[32,128], index: 7, kind: input, shape index: {}]
  %s8 = inlined_call_operand.vmem [shape: f32[32,128], index: 8, kind: input, shape index: {}]
  %s9 = inlined_call_operand.vmem [shape: f32[1,128], index: 9, kind: input, shape index: {}]
  %s10 = inlined_call_operand.vmem [shape: f32[32,16], index: 10, kind: input, shape index: {}]
  %s11 = inlined_call_operand.vmem [shape: f32[64,16], index: 11, kind: input, shape index: {}]
  %s12 = inlined_call_operand.vmem [shape: f32[1,16], index: 12, kind: input, shape index: {}]
  %s13 = inlined_call_operand.vmem [shape: f32[2,128], index: 13, kind: output, shape index: {}]
  %s14 = sld [smem:[#allocation0]]
  $region62: #{decode_forward.1} parent=0
    _
  %s16 = ssub.s32 1, %s14
  %s17 = scalar_select 0, %s16, %s14
  // Predicated region
  $region2: #{decode_forward.1} parent=0 // pred_check
    _
  $region3: #{decode_forward.1} parent=0 // pred_check_branch
    %19 = sbr.rel (0) target = $region5
  $region4: #{decode_forward.1} parent=0 // pred_region
    _
  $region5: #{decode_forward.1} parent=0 // pred_fallthru
    _
  // Predicated region
  $region6: #{decode_forward.1} parent=0 // pred_check
    _
  $region7: #{decode_forward.1} parent=0 // pred_check_branch
    %21 = sbr.rel (0) target = $region9
  $region8: #{decode_forward.1} parent=0 // pred_region
    _
  $region9: #{decode_forward.1} parent=0 // pred_fallthru
    _
  // Predicated region
  $region10: #{decode_forward.1} parent=0 // pred_check
    _
  $region11: #{decode_forward.1} parent=0 // pred_check_branch
    %23 = sbr.rel (0) target = $region13
  $region12: #{decode_forward.1} parent=0 // pred_region
    _
  $region13: #{decode_forward.1} parent=0 // pred_fallthru
    _
  // Predicated region
  $region14: #{decode_forward.1} parent=0 // pred_check
    _
  $region15: #{decode_forward.1} parent=0 // pred_check_branch
    %25 = sbr.rel (0) target = $region17
  $region16: #{decode_forward.1} parent=0 // pred_region
    _
  $region17: #{decode_forward.1} parent=0 // pred_fallthru
    _
  // Predicated region
  $region18: #{decode_forward.1} parent=0 // pred_check
    _
  $region19: #{decode_forward.1} parent=0 // pred_check_branch
    %27 = sbr.rel (0) target = $region21
  $region20: #{decode_forward.1} parent=0 // pred_region
    _
  $region21: #{decode_forward.1} parent=0 // pred_fallthru
    _
  // Predicated region
  $region22: #{decode_forward.1} parent=0 // pred_check
    _
  $region23: #{decode_forward.1} parent=0 // pred_check_branch
    %29 = sbr.rel (0) target = $region25
  $region24: #{decode_forward.1} parent=0 // pred_region
    _
  $region25: #{decode_forward.1} parent=0 // pred_fallthru
    _
  // Predicated region
  $region26: #{decode_forward.1} parent=0 // pred_check
    _
  $region27: #{decode_forward.1} parent=0 // pred_check_branch
    %31 = sbr.rel (0) target = $region29
  $region28: #{decode_forward.1} parent=0 // pred_region
    _
  $region29: #{decode_forward.1} parent=0 // pred_fallthru
    _
  // Predicated region
  $region30: #{decode_forward.1} parent=0 // pred_check
    _
  $region31: #{decode_forward.1} parent=0 // pred_check_branch
    %33 = sbr.rel (0) target = $region33
  $region32: #{decode_forward.1} parent=0 // pred_region
    _
  $region33: #{decode_forward.1} parent=0 // pred_fallthru
    _
  // Predicated region
  $region34: #{decode_forward.1} parent=0 // pred_check
    _
  $region35: #{decode_forward.1} parent=0 // pred_check_branch
    %35 = sbr.rel (0) target = $region37
  $region36: #{decode_forward.1} parent=0 // pred_region
    _
  $region37: #{decode_forward.1} parent=0 // pred_fallthru
    _
  // Predicated region
  $region38: #{decode_forward.1} parent=0 // pred_check
    _
  $region39: #{decode_forward.1} parent=0 // pred_check_branch
    %37 = sbr.rel (0) target = $region41
  $region40: #{decode_forward.1} parent=0 // pred_region
    _
  $region41: #{decode_forward.1} parent=0 // pred_fallthru
    _
  // Predicated region
  $region42: #{decode_forward.1} parent=0 // pred_check
    _
  $region43: #{decode_forward.1} parent=0 // pred_check_branch
    %39 = sbr.rel (0) target = $region45
  $region44: #{decode_forward.1} parent=0 // pred_region
    _
  $region45: #{decode_forward.1} parent=0 // pred_fallthru
    _
  // Predicated region
  $region46: #{decode_forward.1} parent=0 // pred_check
    _
  $region47: #{decode_forward.1} parent=0 // pred_check_branch
    %41 = sbr.rel (0) target = $region49
  $region48: #{decode_forward.1} parent=0 // pred_region
    _
  $region49: #{decode_forward.1} parent=0 // pred_fallthru
    _
  // Predicated region
  $region50: #{decode_forward.1} parent=0 // pred_check
    _
  $region51: #{decode_forward.1} parent=0 // pred_check_branch
    %43 = sbr.rel (0) target = $region53
  $region52: #{decode_forward.1} parent=0 // pred_region
    _
  $region53: #{decode_forward.1} parent=0 // pred_fallthru
    _
  %v44 = vld [vmem:[%s0] sm:$0xff]
  %v45 = vld [vmem:[%s0 + $0x8] sm:$0xff]
  %v46 = vld [vmem:[%s1] sm:$0xff]
  %v47 = vld [vmem:[%s1 + $0x8] sm:$0xff]
  %vm48 = vcmask 130048
  %v50 = vsel %vm48, %v46, 0
  %v53 = vsel %vm48, %v47, 0
  %55 = vmatprep.subr.mxu0 0.0
  %56 = vmatpush1.msra.mxu0 %v44
  %57 = vmatprep.subr.mxu0 0.0
  %58 = vmatpush1.msra.mxu0 %v45
  %59 = vmatprep.subr.mxu0 0.0
  %60 = vmatpush1.msra.mxu0 0.0
  %61 = vmatprep.subr.mxu0 0.0
  %62 = vmatpush1.msra.mxu0 0.0
  %63 = vmatprep.subr.mxu0 0.0
  %64 = vmatpush1.msra.mxu0 0.0
  %65 = vmatprep.subr.mxu0 0.0
  %66 = vmatpush1.msra.mxu0 0.0
  %67 = vmatprep.subr.mxu0 0.0
  %68 = vmatpush1.msra.mxu0 0.0
  %69 = vmatprep.subr.mxu0 0.0
  %70 = vmatpush1.msra.mxu0 0.0
  %71 = vmatprep.subr.mxu0 0.0
  %72 = vmatpush1.msra.mxu0 0.0
  %73 = vmatprep.subr.mxu0 0.0
  %74 = vmatpush1.msra.mxu0 0.0
  %75 = vmatprep.subr.mxu0 0.0
  %76 = vmatpush1.msra.mxu0 0.0
  %77 = vmatprep.subr.mxu0 0.0
  %78 = vmatpush1.msra.mxu0 0.0
  %79 = vmatprep.subr.mxu0 0.0
  %80 = vmatpush1.msra.mxu0 0.0
  %81 = vmatprep.subr.mxu0 0.0
  %82 = vmatpush1.msra.mxu0 0.0
  %83 = vmatprep.subr.mxu0 0.0
  %84 = vmatpush1.msra.mxu0 0.0
  %85 = vmatprep.subr.mxu0 0.0
  %86 = vmatpush1.msra.mxu0 0.0
  %87 = vmatprep.subr.mxu0 0.0
  %88 = vmatpush1.msra.mxu0 0.0
  %89 = vmatprep.subr.mxu0 0.0
  %90 = vmatpush1.msra.mxu0 0.0
  %91 = vmatprep.subr.mxu0 0.0
  %92 = vmatpush1.msra.mxu0 0.0
  %93 = vmatprep.subr.mxu0 0.0
  %94 = vmatpush1.msra.mxu0 0.0
  %95 = vmatprep.subr.mxu0 0.0
  %96 = vmatpush1.msra.mxu0 0.0
  %97 = vmatprep.subr.mxu0 0.0
  %98 = vmatpush1.msra.mxu0 0.0
  %99 = vmatprep.subr.mxu0 0.0
  %100 = vmatpush1.msra.mxu0 0.0
  %101 = vmatprep.subr.mxu0 0.0
  %102 = vmatpush1.msra.mxu0 0.0
  %103 = vmatprep.subr.mxu0 0.0
  %104 = vmatpush1.msra.mxu0 0.0
  %105 = vmatprep.subr.mxu0 0.0
  %106 = vmatpush1.msra.mxu0 0.0
  %107 = vmatprep.subr.mxu0 0.0
  %108 = vmatpush1.msra.mxu0 0.0
  %109 = vmatprep.subr.mxu0 0.0
  %110 = vmatpush1.msra.mxu0 0.0
  %111 = vmatprep.subr.mxu0 0.0
  %112 = vmatpush1.msra.mxu0 0.0
  %113 = vmatprep.subr.mxu0 0.0
  %114 = vmatpush1.msra.mxu0 0.0
  %115 = vmatprep.subr.mxu0 0.0
  %116 = vmatpush1.msra.mxu0 0.0
  %117 = vmatprep.subr.mxu0 0.0
  %118 = vmatpush1.msra.mxu0 0.0
  %119 = vmatprep.mubr.f32.mxu0 0.0
  %120 = vmatmul.mubr.f32.gmra.mrb[0].mxu0 %v50
  %v121 = vpop.f32.mrb[0].mxu0
  %v122 = vadd.f32 0.0, %v121
  %v123 = vpop.f32.mrb[0].mxu0
  %124 = vmatprep.mubr.f32.mxu0 0.0
  %125 = vmatmul.mubr.f32.gmra.mrb[0].mxu0 %v53
  %v126 = vpop.f32.mrb[0].mxu0
  %v127 = vadd.f32 0.0, %v126
  %v128 = vpop.f32.mrb[0].mxu0
  %129 = vdwg.mxu0
  %v130 = vld [vmem:[%s4] sm:$0xff]
  %v131 = vld [vmem:[%s4 + $0x8] sm:$0xff]
  %v132 = vld [vmem:[%s4 + $0x10] sm:$0xff]
  %v133 = vld [vmem:[%s4 + $0x18] sm:$0xff]
  %v134 = vld [vmem:[%s4 + $0x20] sm:$0xff]
  %v135 = vld [vmem:[%s4 + $0x28] sm:$0xff]
  %v136 = vld [vmem:[%s4 + $0x30] sm:$0xff]
  %v137 = vld [vmem:[%s4 + $0x38] sm:$0xff]
  %v138 = vld [vmem:[%s2] sm:$0xff]
  %v139 = vld [vmem:[%s2 + $0x8] sm:$0xff]
  %v140 = vld [vmem:[%s5] sm:$0xff]
  %v141 = vld [vmem:[%s5 + $0x8] sm:$0xff]
  %v143 = vsel %vm48, %v138, 0
  %v146 = vsel %vm48, %v139, 0
  %148 = vmatprep.subr.mxu0 0.0
  %149 = vmatpush1.msra.mxu0 %v140
  %150 = vmatprep.subr.mxu0 0.0
  %151 = vmatpush1.msra.mxu0 %v141
  %152 = vmatprep.subr.mxu0 0.0
  %153 = vmatpush1.msra.mxu0 0.0
  %154 = vmatprep.subr.mxu0 0.0
  %155 = vmatpush1.msra.mxu0 0.0
  %156 = vmatprep.subr.mxu0 0.0
  %157 = vmatpush1.msra.mxu0 0.0
  %158 = vmatprep.subr.mxu0 0.0
  %159 = vmatpush1.msra.mxu0 0.0
  %160 = vmatprep.subr.mxu0 0.0
  %161 = vmatpush1.msra.mxu0 0.0
  %162 = vmatprep.subr.mxu0 0.0
  %163 = vmatpush1.msra.mxu0 0.0
  %164 = vmatprep.subr.mxu0 0.0
  %165 = vmatpush1.msra.mxu0 0.0
  %166 = vmatprep.subr.mxu0 0.0
  %167 = vmatpush1.msra.mxu0 0.0
  %168 = vmatprep.subr.mxu0 0.0
  %169 = vmatpush1.msra.mxu0 0.0
  %170 = vmatprep.subr.mxu0 0.0
  %171 = vmatpush1.msra.mxu0 0.0
  %172 = vmatprep.subr.mxu0 0.0
  %173 = vmatpush1.msra.mxu0 0.0
  %174 = vmatprep.subr.mxu0 0.0
  %175 = vmatpush1.msra.mxu0 0.0
  %176 = vmatprep.subr.mxu0 0.0
  %177 = vmatpush1.msra.mxu0 0.0
  %178 = vmatprep.subr.mxu0 0.0
  %179 = vmatpush1.msra.mxu0 0.0
  %180 = vmatprep.subr.mxu0 0.0
  %181 = vmatpush1.msra.mxu0 0.0
  %182 = vmatprep.subr.mxu0 0.0
  %183 = vmatpush1.msra.mxu0 0.0
  %184 = vmatprep.subr.mxu0 0.0
  %185 = vmatpush1.msra.mxu0 0.0
  %186 = vmatprep.subr.mxu0 0.0
  %187 = vmatpush1.msra.mxu0 0.0
  %188 = vmatprep.subr.mxu0 0.0
  %189 = vmatpush1.msra.mxu0 0.0
  %190 = vmatprep.subr.mxu0 0.0
  %191 = vmatpush1.msra.mxu0 0.0
  %192 = vmatprep.subr.mxu0 0.0
  %193 = vmatpush1.msra.mxu0 0.0
  %194 = vmatprep.subr.mxu0 0.0
  %195 = vmatpush1.msra.mxu0 0.0
  %196 = vmatprep.subr.mxu0 0.0
  %197 = vmatpush1.msra.mxu0 0.0
  %198 = vmatprep.subr.mxu0 0.0
  %199 = vmatpush1.msra.mxu0 0.0
  %200 = vmatprep.subr.mxu0 0.0
  %201 = vmatpush1.msra.mxu0 0.0
  %202 = vmatprep.subr.mxu0 0.0
  %203 = vmatpush1.msra.mxu0 0.0
  %204 = vmatprep.subr.mxu0 0.0
  %205 = vmatpush1.msra.mxu0 0.0
  %206 = vmatprep.subr.mxu0 0.0
  %207 = vmatpush1.msra.mxu0 0.0
  %208 = vmatprep.subr.mxu0 0.0
  %209 = vmatpush1.msra.mxu0 0.0
  %210 = vmatprep.subr.mxu0 0.0
  %211 = vmatpush1.msra.mxu0 0.0
  %212 = vmatprep.mubr.f32.mxu0 0.0
  %213 = vmatmul.mubr.f32.gmra.mrb[0].mxu0 %v143
  %v214 = vpop.f32.mrb[0].mxu0
  %v215 = vadd.f32 0.0, %v214
  %v216 = vpop.f32.mrb[0].mxu0
  %217 = vmatprep.mubr.f32.mxu0 0.0
  %218 = vmatmul.mubr.f32.gmra.mrb[0].mxu0 %v146
  %v219 = vpop.f32.mrb[0].mxu0
  %v220 = vadd.f32 0.0, %v219
  %v221 = vpop.f32.mrb[0].mxu0
  %222 = vdwg.mxu0
  %vm223 = vcmask 523264
  %v225 = vsel %vm223, %v122, 0
  %v228 = vsel %vm223, %v127, 0
  %230 = vmatprep.subr.mxu0 0.0
  %231 = vmatpush1.msra.mxu0 %v130
  %232 = vmatprep.subr.mxu0 0.0
  %233 = vmatpush1.msra.mxu0 %v131
  %234 = vmatprep.subr.mxu0 0.0
  %235 = vmatpush1.msra.mxu0 %v132
  %236 = vmatprep.subr.mxu0 0.0
  %237 = vmatpush1.msra.mxu0 %v133
  %238 = vmatprep.subr.mxu0 0.0
  %239 = vmatpush1.msra.mxu0 %v134
  %240 = vmatprep.subr.mxu0 0.0
  %241 = vmatpush1.msra.mxu0 %v135
  %242 = vmatprep.subr.mxu0 0.0
  %243 = vmatpush1.msra.mxu0 %v136
  %244 = vmatprep.subr.mxu0 0.0
  %245 = vmatpush1.msra.mxu0 %v137
  %246 = vmatprep.subr.mxu0 0.0
  %247 = vmatpush1.msra.mxu0 0.0
  %248 = vmatprep.subr.mxu0 0.0
  %249 = vmatpush1.msra.mxu0 0.0
  %250 = vmatprep.subr.mxu0 0.0
  %251 = vmatpush1.msra.mxu0 0.0
  %252 = vmatprep.subr.mxu0 0.0
  %253 = vmatpush1.msra.mxu0 0.0
  %254 = vmatprep.subr.mxu0 0.0
  %255 = vmatpush1.msra.mxu0 0.0
  %256 = vmatprep.subr.mxu0 0.0
  %257 = vmatpush1.msra.mxu0 0.0
  %258 = vmatprep.subr.mxu0 0.0
  %259 = vmatpush1.msra.mxu0 0.0
  %260 = vmatprep.subr.mxu0 0.0
  %261 = vmatpush1.msra.mxu0 0.0
  %262 = vmatprep.subr.mxu0 0.0
  %263 = vmatpush1.msra.mxu0 0.0
  %264 = vmatprep.subr.mxu0 0.0
  %265 = vmatpush1.msra.mxu0 0.0
  %266 = vmatprep.subr.mxu0 0.0
  %267 = vmatpush1.msra.mxu0 0.0
  %268 = vmatprep.subr.mxu0 0.0
  %269 = vmatpush1.msra.mxu0 0.0
  %270 = vmatprep.subr.mxu0 0.0
  %271 = vmatpush1.msra.mxu0 0.0
  %272 = vmatprep.subr.mxu0 0.0
  %273 = vmatpush1.msra.mxu0 0.0
  %274 = vmatprep.subr.mxu0 0.0
  %275 = vmatpush1.msra.mxu0 0.0
  %276 = vmatprep.subr.mxu0 0.0
  %277 = vmatpush1.msra.mxu0 0.0
  %278 = vmatprep.subr.mxu0 0.0
  %279 = vmatpush1.msra.mxu0 0.0
  %280 = vmatprep.subr.mxu0 0.0
  %281 = vmatpush1.msra.mxu0 0.0
  %282 = vmatprep.subr.mxu0 0.0
  %283 = vmatpush1.msra.mxu0 0.0
  %284 = vmatprep.subr.mxu0 0.0
  %285 = vmatpush1.msra.mxu0 0.0
  %286 = vmatprep.subr.mxu0 0.0
  %287 = vmatpush1.msra.mxu0 0.0
  %288 = vmatprep.subr.mxu0 0.0
  %289 = vmatpush1.msra.mxu0 0.0
  %290 = vmatprep.subr.mxu0 0.0
  %291 = vmatpush1.msra.mxu0 0.0
  %292 = vmatprep.subr.mxu0 0.0
  %293 = vmatpush1.msra.mxu0 0.0
  %294 = vmatprep.mubr.f32.mxu0 0.0
  %295 = vmatmul.mubr.f32.gmra.mrb[0].mxu0 %v225
  %v296 = vpop.f32.mrb[0].mxu0
  %v297 = vadd.f32 %v215, %v296
  %v298 = vpop.f32.mrb[0].mxu0
  %299 = vmatprep.mubr.f32.mxu0 0.0
  %300 = vmatmul.mubr.f32.gmra.mrb[0].mxu0 %v228
  %v301 = vpop.f32.mrb[0].mxu0
  %v302 = vadd.f32 %v220, %v301
  %v303 = vpop.f32.mrb[0].mxu0
  %304 = vdwg.mxu0
  %v305 = vld [vmem:[%s6] sm:$0x1]
  %v307 = vlaneseq
  %v308 = vshrl.u32 %v307, 7
  %v309 = vsub.s32 0, %v308
  %v310 = vrot.slane %v305, %v309
  %v312 = vadd.f32 %v297, %v310
  %v313 = vadd.f32 %v302, %v310
  %v314 = vlaneseq
  %v315 = vshrl.u32 %v314, 7
  %v316 = vadd.s32 %v315, 8
  %vm317 = vcmp.ge.s32.totalorder %v315, 2
  %vm318 = vcmp.ge.s32.totalorder %v316, 2
  %v319 = vsel %vm317, 1, 0
  %v320 = vsel %vm318, 1, 0
  %v321 = vcvt.s32.f32 %v319
  %v322 = vcvt.s32.f32 %v320
  %v323 = vtanh.pop %v312
  %v324 = vtanh.pop %v313
  %v325 = vmul.f32 %v323, %v321
  %v326 = vmul.f32 %v324, %v322
  %v327 = vld [vmem:[%s7] sm:$0xff]
  %v328 = vld [vmem:[%s7 + $0x8] sm:$0xff]
  %v329 = vld [vmem:[%s7 + $0x10] sm:$0xff]
  %v330 = vld [vmem:[%s7 + $0x18] sm:$0xff]
  %v331 = vld [vmem:[%s9] sm:$0x1]
  %v333 = vlaneseq
  %v334 = vshrl.u32 %v333, 7
  %v335 = vsub.s32 0, %v334
  %v336 = vrot.slane %v331, %v335
  %vm338 = vcmask 261120
  %v340 = vsel %vm338, %v325, 0
  %v343 = vsel %vm338, %v326, 0
  %345 = vmatprep.subr.mxu0 0.0
  %346 = vmatpush1.msra.mxu0 %v327
  %347 = vmatprep.subr.mxu0 0.0
  %348 = vmatpush1.msra.mxu0 %v328
  %349 = vmatprep.subr.mxu0 0.0
  %350 = vmatpush1.msra.mxu0 %v329
  %351 = vmatprep.subr.mxu0 0.0
  %352 = vmatpush1.msra.mxu0 %v330
  %353 = vmatprep.subr.mxu0 0.0
  %354 = vmatpush1.msra.mxu0 0.0
  %355 = vmatprep.subr.mxu0 0.0
  %356 = vmatpush1.msra.mxu0 0.0
  %357 = vmatprep.subr.mxu0 0.0
  %358 = vmatpush1.msra.mxu0 0.0
  %359 = vmatprep.subr.mxu0 0.0
  %360 = vmatpush1.msra.mxu0 0.0
  %361 = vmatprep.subr.mxu0 0.0
  %362 = vmatpush1.msra.mxu0 0.0
  %363 = vmatprep.subr.mxu0 0.0
  %364 = vmatpush1.msra.mxu0 0.0
  %365 = vmatprep.subr.mxu0 0.0
  %366 = vmatpush1.msra.mxu0 0.0
  %367 = vmatprep.subr.mxu0 0.0
  %368 = vmatpush1.msra.mxu0 0.0
  %369 = vmatprep.subr.mxu0 0.0
  %370 = vmatpush1.msra.mxu0 0.0
  %371 = vmatprep.subr.mxu0 0.0
  %372 = vmatpush1.msra.mxu0 0.0
  %373 = vmatprep.subr.mxu0 0.0
  %374 = vmatpush1.msra.mxu0 0.0
  %375 = vmatprep.subr.mxu0 0.0
  %376 = vmatpush1.msra.mxu0 0.0
  %377 = vmatprep.subr.mxu0 0.0
  %378 = vmatpush1.msra.mxu0 0.0
  %379 = vmatprep.subr.mxu0 0.0
  %380 = vmatpush1.msra.mxu0 0.0
  %381 = vmatprep.subr.mxu0 0.0
  %382 = vmatpush1.msra.mxu0 0.0
  %383 = vmatprep.subr.mxu0 0.0
  %384 = vmatpush1.msra.mxu0 0.0
  %385 = vmatprep.subr.mxu0 0.0
  %386 = vmatpush1.msra.mxu0 0.0
  %387 = vmatprep.subr.mxu0 0.0
  %388 = vmatpush1.msra.mxu0 0.0
  %389 = vmatprep.subr.mxu0 0.0
  %390 = vmatpush1.msra.mxu0 0.0
  %391 = vmatprep.subr.mxu0 0.0
  %392 = vmatpush1.msra.mxu0 0.0
  %393 = vmatprep.subr.mxu0 0.0
  %394 = vmatpush1.msra.mxu0 0.0
  %395 = vmatprep.subr.mxu0 0.0
  %396 = vmatpush1.msra.mxu0 0.0
  %397 = vmatprep.subr.mxu0 0.0
  %398 = vmatpush1.msra.mxu0 0.0
  %399 = vmatprep.subr.mxu0 0.0
  %400 = vmatpush1.msra.mxu0 0.0
  %401 = vmatprep.subr.mxu0 0.0
  %402 = vmatpush1.msra.mxu0 0.0
  %403 = vmatprep.subr.mxu0 0.0
  %404 = vmatpush1.msra.mxu0 0.0
  %405 = vmatprep.subr.mxu0 0.0
  %406 = vmatpush1.msra.mxu0 0.0
  %407 = vmatprep.subr.mxu0 0.0
  %408 = vmatpush1.msra.mxu0 0.0
  %409 = vmatprep.mubr.f32.mxu0 0.0
  %410 = vmatmul.mubr.f32.gmra.mrb[0].mxu0 %v340
  %v411 = vpop.f32.mrb[0].mxu0
  %v412 = vadd.f32 %v336, %v411
  %v413 = vpop.f32.mrb[0].mxu0
  %414 = vmatprep.mubr.f32.mxu0 0.0
  %415 = vmatmul.mubr.f32.gmra.mrb[0].mxu0 %v343
  %v416 = vpop.f32.mrb[0].mxu0
  %v417 = vadd.f32 %v336, %v416
  %v418 = vpop.f32.mrb[0].mxu0
  %419 = vdwg.mxu0
  %v420 = vld [vmem:[%s8] sm:$0xff]
  %v421 = vld [vmem:[%s8 + $0x8] sm:$0xff]
  %v422 = vld [vmem:[%s8 + $0x10] sm:$0xff]
  %v423 = vld [vmem:[%s8 + $0x18] sm:$0xff]
  %v425 = vsel %vm338, 0.0, 0
  %427 = vmatprep.subr.mxu0 0.0
  %428 = vmatpush1.msra.mxu0 %v420
  %429 = vmatprep.subr.mxu0 0.0
  %430 = vmatpush1.msra.mxu0 %v421
  %431 = vmatprep.subr.mxu0 0.0
  %432 = vmatpush1.msra.mxu0 %v422
  %433 = vmatprep.subr.mxu0 0.0
  %434 = vmatpush1.msra.mxu0 %v423
  %435 = vmatprep.subr.mxu0 0.0
  %436 = vmatpush1.msra.mxu0 0.0
  %437 = vmatprep.subr.mxu0 0.0
  %438 = vmatpush1.msra.mxu0 0.0
  %439 = vmatprep.subr.mxu0 0.0
  %440 = vmatpush1.msra.mxu0 0.0
  %441 = vmatprep.subr.mxu0 0.0
  %442 = vmatpush1.msra.mxu0 0.0
  %443 = vmatprep.subr.mxu0 0.0
  %444 = vmatpush1.msra.mxu0 0.0
  %445 = vmatprep.subr.mxu0 0.0
  %446 = vmatpush1.msra.mxu0 0.0
  %447 = vmatprep.subr.mxu0 0.0
  %448 = vmatpush1.msra.mxu0 0.0
  %449 = vmatprep.subr.mxu0 0.0
  %450 = vmatpush1.msra.mxu0 0.0
  %451 = vmatprep.subr.mxu0 0.0
  %452 = vmatpush1.msra.mxu0 0.0
  %453 = vmatprep.subr.mxu0 0.0
  %454 = vmatpush1.msra.mxu0 0.0
  %455 = vmatprep.subr.mxu0 0.0
  %456 = vmatpush1.msra.mxu0 0.0
  %457 = vmatprep.subr.mxu0 0.0
  %458 = vmatpush1.msra.mxu0 0.0
  %459 = vmatprep.subr.mxu0 0.0
  %460 = vmatpush1.msra.mxu0 0.0
  %461 = vmatprep.subr.mxu0 0.0
  %462 = vmatpush1.msra.mxu0 0.0
  %463 = vmatprep.subr.mxu0 0.0
  %464 = vmatpush1.msra.mxu0 0.0
  %465 = vmatprep.subr.mxu0 0.0
  %466 = vmatpush1.msra.mxu0 0.0
  %467 = vmatprep.subr.mxu0 0.0
  %468 = vmatpush1.msra.mxu0 0.0
  %469 = vmatprep.subr.mxu0 0.0
  %470 = vmatpush1.msra.mxu0 0.0
  %471 = vmatprep.subr.mxu0 0.0
  %472 = vmatpush1.msra.mxu0 0.0
  %473 = vmatprep.subr.mxu0 0.0
  %474 = vmatpush1.msra.mxu0 0.0
  %475 = vmatprep.subr.mxu0 0.0
  %476 = vmatpush1.msra.mxu0 0.0
  %477 = vmatprep.subr.mxu0 0.0
  %478 = vmatpush1.msra.mxu0 0.0
  %479 = vmatprep.subr.mxu0 0.0
  %480 = vmatpush1.msra.mxu0 0.0
  %481 = vmatprep.subr.mxu0 0.0
  %482 = vmatpush1.msra.mxu0 0.0
  %483 = vmatprep.subr.mxu0 0.0
  %484 = vmatpush1.msra.mxu0 0.0
  %485 = vmatprep.subr.mxu0 0.0
  %486 = vmatpush1.msra.mxu0 0.0
  %487 = vmatprep.subr.mxu0 0.0
  %488 = vmatpush1.msra.mxu0 0.0
  %489 = vmatprep.subr.mxu0 0.0
  %490 = vmatpush1.msra.mxu0 0.0
  %491 = vmatprep.mubr.f32.mxu0 0.0
  %492 = vmatmul.mubr.f32.gmra.mrb[0].mxu0 %v425
  %v493 = vpop.f32.mrb[0].mxu0
  %v494 = vadd.f32 0.0, %v493
  %v495 = vpop.f32.mrb[0].mxu0
  %496 = vdwg.mxu0
  %v497 = vadd.f32 %v412, %v494
  %v498 = vxor.u32 %v497, 2147483648
  %v499 = vmul.f32 %v498, 1.442695
  %v500 = vpow.pop %v499
  %v501 = vadd.f32 %v500, 1.0
  %v502 = vrcp.pop %v501
  %v503 = vmul.f32 1.0, %v502
  %v504 = vtanh.pop %v497
  %v505 = vmul.f32 %v503, 0.0
  %507 = vrot.lane.b32.xlu0 %v504, 64
  %v508 = vpop.permute.xlu0 %507
  %v510 = vmul.f32 %v503, %v508
  %512 = vrot.lane.b32.xlu0 %v510, 32
  %v513 = vpop.permute.xlu0 %512
  %v515 = vadd.f32 %v505, %v513
  %v516 = vtanh.pop %v515
  %518 = vrot.lane.b32.xlu0 %v516, 64
  %v519 = vpop.permute.xlu0 %518
  %v521 = vmul.f32 %v503, %v519
  %523 = vrot.lane.b32.xlu0 %v521, 32
  %v524 = vpop.permute.xlu0 %523
  %v525 = vsel %vm338, %v524, 0
  %527 = vmatprep.subr.mxu0 0.0
  %528 = vmatpush1.msra.mxu0 %v420
  %529 = vmatprep.subr.mxu0 0.0
  %530 = vmatpush1.msra.mxu0 %v421
  %531 = vmatprep.subr.mxu0 0.0
  %532 = vmatpush1.msra.mxu0 %v422
  %533 = vmatprep.subr.mxu0 0.0
  %534 = vmatpush1.msra.mxu0 %v423
  %535 = vmatprep.subr.mxu0 0.0
  %536 = vmatpush1.msra.mxu0 0.0
  %537 = vmatprep.subr.mxu0 0.0
  %538 = vmatpush1.msra.mxu0 0.0
  %539 = vmatprep.subr.mxu0 0.0
  %540 = vmatpush1.msra.mxu0 0.0
  %541 = vmatprep.subr.mxu0 0.0
  %542 = vmatpush1.msra.mxu0 0.0
  %543 = vmatprep.subr.mxu0 0.0
  %544 = vmatpush1.msra.mxu0 0.0
  %545 = vmatprep.subr.mxu0 0.0
  %546 = vmatpush1.msra.mxu0 0.0
  %547 = vmatprep.subr.mxu0 0.0
  %548 = vmatpush1.msra.mxu0 0.0
  %549 = vmatprep.subr.mxu0 0.0
  %550 = vmatpush1.msra.mxu0 0.0
  %551 = vmatprep.subr.mxu0 0.0
  %552 = vmatpush1.msra.mxu0 0.0
  %553 = vmatprep.subr.mxu0 0.0
  %554 = vmatpush1.msra.mxu0 0.0
  %555 = vmatprep.subr.mxu0 0.0
  %556 = vmatpush1.msra.mxu0 0.0
  %557 = vmatprep.subr.mxu0 0.0
  %558 = vmatpush1.msra.mxu0 0.0
  %559 = vmatprep.subr.mxu0 0.0
  %560 = vmatpush1.msra.mxu0 0.0
  %561 = vmatprep.subr.mxu0 0.0
  %562 = vmatpush1.msra.mxu0 0.0
  %563 = vmatprep.subr.mxu0 0.0
  %564 = vmatpush1.msra.mxu0 0.0
  %565 = vmatprep.subr.mxu0 0.0
  %566 = vmatpush1.msra.mxu0 0.0
  %567 = vmatprep.subr.mxu0 0.0
  %568 = vmatpush1.msra.mxu0 0.0
  %569 = vmatprep.subr.mxu0 0.0
  %570 = vmatpush1.msra.mxu0 0.0
  %571 = vmatprep.subr.mxu0 0.0
  %572 = vmatpush1.msra.mxu0 0.0
  %573 = vmatprep.subr.mxu0 0.0
  %574 = vmatpush1.msra.mxu0 0.0
  %575 = vmatprep.subr.mxu0 0.0
  %576 = vmatpush1.msra.mxu0 0.0
  %577 = vmatprep.subr.mxu0 0.0
  %578 = vmatpush1.msra.mxu0 0.0
  %579 = vmatprep.subr.mxu0 0.0
  %580 = vmatpush1.msra.mxu0 0.0
  %581 = vmatprep.subr.mxu0 0.0
  %582 = vmatpush1.msra.mxu0 0.0
  %583 = vmatprep.subr.mxu0 0.0
  %584 = vmatpush1.msra.mxu0 0.0
  %585 = vmatprep.subr.mxu0 0.0
  %586 = vmatpush1.msra.mxu0 0.0
  %587 = vmatprep.subr.mxu0 0.0
  %588 = vmatpush1.msra.mxu0 0.0
  %589 = vmatprep.subr.mxu0 0.0
  %590 = vmatpush1.msra.mxu0 0.0
  %591 = vmatprep.mubr.f32.mxu0 0.0
  %592 = vmatmul.mubr.f32.gmra.mrb[0].mxu0 %v525
  %v593 = vpop.f32.mrb[0].mxu0
  %v594 = vadd.f32 0.0, %v593
  %v595 = vpop.f32.mrb[0].mxu0
  %596 = vdwg.mxu0
  %v598 = vrot.slane %v594, 6
  %v600 = vadd.f32 %v412, %v598
  %v601 = vxor.u32 %v600, 2147483648
  %v602 = vmul.f32 %v601, 1.442695
  %v603 = vpow.pop %v602
  %v604 = vadd.f32 %v603, 1.0
  %v605 = vrcp.pop %v604
  %v606 = vmul.f32 1.0, %v605
  %v607 = vtanh.pop %v600
  %v609 = vrot.slane %v515, 6
  %v611 = vmul.f32 %v606, %v609
  %613 = vrot.lane.b32.xlu0 %v607, 64
  %v614 = vpop.permute.xlu0 %613
  %v616 = vmul.f32 %v606, %v614
  %618 = vrot.lane.b32.xlu0 %v616, 32
  %v619 = vpop.permute.xlu0 %618
  %v621 = vadd.f32 %v611, %v619
  %v622 = vtanh.pop %v621
  %624 = vrot.lane.b32.xlu0 %v622, 64
  %v625 = vpop.permute.xlu0 %624
  %v627 = vmul.f32 %v606, %v625
  %v629 = vrot.slane %v627, 2
  %630 = vrot.lane.b32.xlu0 %v629, 32
  %v631 = vpop.permute.xlu0 %630
  %v632 = vsel %vm338, %v631, 0
  %634 = vmatprep.subr.mxu0 0.0
  %635 = vmatpush1.msra.mxu0 %v420
  %636 = vmatprep.subr.mxu0 0.0
  %637 = vmatpush1.msra.mxu0 %v421
  %638 = vmatprep.subr.mxu0 0.0
  %639 = vmatpush1.msra.mxu0 %v422
  %640 = vmatprep.subr.mxu0 0.0
  %641 = vmatpush1.msra.mxu0 %v423
  %642 = vmatprep.subr.mxu0 0.0
  %643 = vmatpush1.msra.mxu0 0.0
  %644 = vmatprep.subr.mxu0 0.0
  %645 = vmatpush1.msra.mxu0 0.0
  %646 = vmatprep.subr.mxu0 0.0
  %647 = vmatpush1.msra.mxu0 0.0
  %648 = vmatprep.subr.mxu0 0.0
  %649 = vmatpush1.msra.mxu0 0.0
  %650 = vmatprep.subr.mxu0 0.0
  %651 = vmatpush1.msra.mxu0 0.0
  %652 = vmatprep.subr.mxu0 0.0
  %653 = vmatpush1.msra.mxu0 0.0
  %654 = vmatprep.subr.mxu0 0.0
  %655 = vmatpush1.msra.mxu0 0.0
  %656 = vmatprep.subr.mxu0 0.0
  %657 = vmatpush1.msra.mxu0 0.0
  %658 = vmatprep.subr.mxu0 0.0
  %659 = vmatpush1.msra.mxu0 0.0
  %660 = vmatprep.subr.mxu0 0.0
  %661 = vmatpush1.msra.mxu0 0.0
  %662 = vmatprep.subr.mxu0 0.0
  %663 = vmatpush1.msra.mxu0 0.0
  %664 = vmatprep.subr.mxu0 0.0
  %665 = vmatpush1.msra.mxu0 0.0
  %666 = vmatprep.subr.mxu0 0.0
  %667 = vmatpush1.msra.mxu0 0.0
  %668 = vmatprep.subr.mxu0 0.0
  %669 = vmatpush1.msra.mxu0 0.0
  %670 = vmatprep.subr.mxu0 0.0
  %671 = vmatpush1.msra.mxu0 0.0
  %672 = vmatprep.subr.mxu0 0.0
  %673 = vmatpush1.msra.mxu0 0.0
  %674 = vmatprep.subr.mxu0 0.0
  %675 = vmatpush1.msra.mxu0 0.0
  %676 = vmatprep.subr.mxu0 0.0
  %677 = vmatpush1.msra.mxu0 0.0
  %678 = vmatprep.subr.mxu0 0.0
  %679 = vmatpush1.msra.mxu0 0.0
  %680 = vmatprep.subr.mxu0 0.0
  %681 = vmatpush1.msra.mxu0 0.0
  %682 = vmatprep.subr.mxu0 0.0
  %683 = vmatpush1.msra.mxu0 0.0
  %684 = vmatprep.subr.mxu0 0.0
  %685 = vmatpush1.msra.mxu0 0.0
  %686 = vmatprep.subr.mxu0 0.0
  %687 = vmatpush1.msra.mxu0 0.0
  %688 = vmatprep.subr.mxu0 0.0
  %689 = vmatpush1.msra.mxu0 0.0
  %690 = vmatprep.subr.mxu0 0.0
  %691 = vmatpush1.msra.mxu0 0.0
  %692 = vmatprep.subr.mxu0 0.0
  %693 = vmatpush1.msra.mxu0 0.0
  %694 = vmatprep.subr.mxu0 0.0
  %695 = vmatpush1.msra.mxu0 0.0
  %696 = vmatprep.subr.mxu0 0.0
  %697 = vmatpush1.msra.mxu0 0.0
  %698 = vmatprep.mubr.f32.mxu0 0.0
  %699 = vmatmul.mubr.f32.gmra.mrb[0].mxu0 %v632
  %v700 = vpop.f32.mrb[0].mxu0
  %v701 = vadd.f32 0.0, %v700
  %v702 = vpop.f32.mrb[0].mxu0
  %703 = vdwg.mxu0
  %v705 = vrot.slane %v701, 4
  %v707 = vadd.f32 %v412, %v705
  %v708 = vxor.u32 %v707, 2147483648
  %v709 = vmul.f32 %v708, 1.442695
  %v710 = vpow.pop %v709
  %v711 = vadd.f32 %v710, 1.0
  %v712 = vrcp.pop %v711
  %v713 = vmul.f32 1.0, %v712
  %v714 = vtanh.pop %v707
  %v716 = vrot.slane %v621, 6
  %v718 = vmul.f32 %v713, %v716
  %720 = vrot.lane.b32.xlu0 %v714, 64
  %v721 = vpop.permute.xlu0 %720
  %v723 = vmul.f32 %v713, %v721
  %725 = vrot.lane.b32.xlu0 %v723, 32
  %v726 = vpop.permute.xlu0 %725
  %v728 = vadd.f32 %v718, %v726
  %v729 = vtanh.pop %v728
  %731 = vrot.lane.b32.xlu0 %v729, 64
  %v732 = vpop.permute.xlu0 %731
  %v734 = vmul.f32 %v713, %v732
  %v736 = vrot.slane %v734, 4
  %737 = vrot.lane.b32.xlu0 %v736, 32
  %v738 = vpop.permute.xlu0 %737
  %v739 = vsel %vm338, %v738, 0
  %741 = vmatprep.subr.mxu0 0.0
  %742 = vmatpush1.msra.mxu0 %v420
  %743 = vmatprep.subr.mxu0 0.0
  %744 = vmatpush1.msra.mxu0 %v421
  %745 = vmatprep.subr.mxu0 0.0
  %746 = vmatpush1.msra.mxu0 %v422
  %747 = vmatprep.subr.mxu0 0.0
  %748 = vmatpush1.msra.mxu0 %v423
  %749 = vmatprep.subr.mxu0 0.0
  %750 = vmatpush1.msra.mxu0 0.0
  %751 = vmatprep.subr.mxu0 0.0
  %752 = vmatpush1.msra.mxu0 0.0
  %753 = vmatprep.subr.mxu0 0.0
  %754 = vmatpush1.msra.mxu0 0.0
  %755 = vmatprep.subr.mxu0 0.0
  %756 = vmatpush1.msra.mxu0 0.0
  %757 = vmatprep.subr.mxu0 0.0
  %758 = vmatpush1.msra.mxu0 0.0
  %759 = vmatprep.subr.mxu0 0.0
  %760 = vmatpush1.msra.mxu0 0.0
  %761 = vmatprep.subr.mxu0 0.0
  %762 = vmatpush1.msra.mxu0 0.0
  %763 = vmatprep.subr.mxu0 0.0
  %764 = vmatpush1.msra.mxu0 0.0
  %765 = vmatprep.subr.mxu0 0.0
  %766 = vmatpush1.msra.mxu0 0.0
  %767 = vmatprep.subr.mxu0 0.0
  %768 = vmatpush1.msra.mxu0 0.0
  %769 = vmatprep.subr.mxu0 0.0
  %770 = vmatpush1.msra.mxu0 0.0
  %771 = vmatprep.subr.mxu0 0.0
  %772 = vmatpush1.msra.mxu0 0.0
  %773 = vmatprep.subr.mxu0 0.0
  %774 = vmatpush1.msra.mxu0 0.0
  %775 = vmatprep.subr.mxu0 0.0
  %776 = vmatpush1.msra.mxu0 0.0
  %777 = vmatprep.subr.mxu0 0.0
  %778 = vmatpush1.msra.mxu0 0.0
  %779 = vmatprep.subr.mxu0 0.0
  %780 = vmatpush1.msra.mxu0 0.0
  %781 = vmatprep.subr.mxu0 0.0
  %782 = vmatpush1.msra.mxu0 0.0
  %783 = vmatprep.subr.mxu0 0.0
  %784 = vmatpush1.msra.mxu0 0.0
  %785 = vmatprep.subr.mxu0 0.0
  %786 = vmatpush1.msra.mxu0 0.0
  %787 = vmatprep.subr.mxu0 0.0
  %788 = vmatpush1.msra.mxu0 0.0
  %789 = vmatprep.subr.mxu0 0.0
  %790 = vmatpush1.msra.mxu0 0.0
  %791 = vmatprep.subr.mxu0 0.0
  %792 = vmatpush1.msra.mxu0 0.0
  %793 = vmatprep.subr.mxu0 0.0
  %794 = vmatpush1.msra.mxu0 0.0
  %795 = vmatprep.subr.mxu0 0.0
  %796 = vmatpush1.msra.mxu0 0.0
  %797 = vmatprep.subr.mxu0 0.0
  %798 = vmatpush1.msra.mxu0 0.0
  %799 = vmatprep.subr.mxu0 0.0
  %800 = vmatpush1.msra.mxu0 0.0
  %801 = vmatprep.subr.mxu0 0.0
  %802 = vmatpush1.msra.mxu0 0.0
  %803 = vmatprep.subr.mxu0 0.0
  %804 = vmatpush1.msra.mxu0 0.0
  %805 = vmatprep.mubr.f32.mxu0 0.0
  %806 = vmatmul.mubr.f32.gmra.mrb[0].mxu0 %v739
  %v807 = vpop.f32.mrb[0].mxu0
  %v808 = vadd.f32 0.0, %v807
  %v809 = vpop.f32.mrb[0].mxu0
  %810 = vdwg.mxu0
  %v812 = vrot.slane %v808, 2
  %v814 = vadd.f32 %v412, %v812
  %v815 = vxor.u32 %v814, 2147483648
  %v816 = vmul.f32 %v815, 1.442695
  %v817 = vpow.pop %v816
  %v818 = vadd.f32 %v817, 1.0
  %v819 = vrcp.pop %v818
  %v820 = vmul.f32 1.0, %v819
  %v821 = vtanh.pop %v814
  %v823 = vrot.slane %v728, 6
  %v825 = vmul.f32 %v820, %v823
  %827 = vrot.lane.b32.xlu0 %v821, 64
  %v828 = vpop.permute.xlu0 %827
  %v830 = vmul.f32 %v820, %v828
  %832 = vrot.lane.b32.xlu0 %v830, 32
  %v833 = vpop.permute.xlu0 %832
  %v835 = vadd.f32 %v825, %v833
  %v836 = vtanh.pop %v835
  %838 = vrot.lane.b32.xlu0 %v836, 64
  %v839 = vpop.permute.xlu0 %838
  %v841 = vmul.f32 %v820, %v839
  %v843 = vrot.slane %v841, 6
  %844 = vrot.lane.b32.xlu0 %v843, 32
  %v845 = vpop.permute.xlu0 %844
  %v846 = vsel %vm338, %v845, 0
  %848 = vmatprep.subr.mxu0 0.0
  %849 = vmatpush1.msra.mxu0 %v420
  %850 = vmatprep.subr.mxu0 0.0
  %851 = vmatpush1.msra.mxu0 %v421
  %852 = vmatprep.subr.mxu0 0.0
  %853 = vmatpush1.msra.mxu0 %v422
  %854 = vmatprep.subr.mxu0 0.0
  %855 = vmatpush1.msra.mxu0 %v423
  %856 = vmatprep.subr.mxu0 0.0
  %857 = vmatpush1.msra.mxu0 0.0
  %858 = vmatprep.subr.mxu0 0.0
  %859 = vmatpush1.msra.mxu0 0.0
  %860 = vmatprep.subr.mxu0 0.0
  %861 = vmatpush1.msra.mxu0 0.0
  %862 = vmatprep.subr.mxu0 0.0
  %863 = vmatpush1.msra.mxu0 0.0
  %864 = vmatprep.subr.mxu0 0.0
  %865 = vmatpush1.msra.mxu0 0.0
  %866 = vmatprep.subr.mxu0 0.0
  %867 = vmatpush1.msra.mxu0 0.0
  %868 = vmatprep.subr.mxu0 0.0
  %869 = vmatpush1.msra.mxu0 0.0
  %870 = vmatprep.subr.mxu0 0.0
  %871 = vmatpush1.msra.mxu0 0.0
  %872 = vmatprep.subr.mxu0 0.0
  %873 = vmatpush1.msra.mxu0 0.0
  %874 = vmatprep.subr.mxu0 0.0
  %875 = vmatpush1.msra.mxu0 0.0
  %876 = vmatprep.subr.mxu0 0.0
  %877 = vmatpush1.msra.mxu0 0.0
  %878 = vmatprep.subr.mxu0 0.0
  %879 = vmatpush1.msra.mxu0 0.0
  %880 = vmatprep.subr.mxu0 0.0
  %881 = vmatpush1.msra.mxu0 0.0
  %882 = vmatprep.subr.mxu0 0.0
  %883 = vmatpush1.msra.mxu0 0.0
  %884 = vmatprep.subr.mxu0 0.0
  %885 = vmatpush1.msra.mxu0 0.0
  %886 = vmatprep.subr.mxu0 0.0
  %887 = vmatpush1.msra.mxu0 0.0
  %888 = vmatprep.subr.mxu0 0.0
  %889 = vmatpush1.msra.mxu0 0.0
  %890 = vmatprep.subr.mxu0 0.0
  %891 = vmatpush1.msra.mxu0 0.0
  %892 = vmatprep.subr.mxu0 0.0
  %893 = vmatpush1.msra.mxu0 0.0
  %894 = vmatprep.subr.mxu0 0.0
  %895 = vmatpush1.msra.mxu0 0.0
  %896 = vmatprep.subr.mxu0 0.0
  %897 = vmatpush1.msra.mxu0 0.0
  %898 = vmatprep.subr.mxu0 0.0
  %899 = vmatpush1.msra.mxu0 0.0
  %900 = vmatprep.subr.mxu0 0.0
  %901 = vmatpush1.msra.mxu0 0.0
  %902 = vmatprep.subr.mxu0 0.0
  %903 = vmatpush1.msra.mxu0 0.0
  %904 = vmatprep.subr.mxu0 0.0
  %905 = vmatpush1.msra.mxu0 0.0
  %906 = vmatprep.subr.mxu0 0.0
  %907 = vmatpush1.msra.mxu0 0.0
  %908 = vmatprep.subr.mxu0 0.0
  %909 = vmatpush1.msra.mxu0 0.0
  %910 = vmatprep.subr.mxu0 0.0
  %911 = vmatpush1.msra.mxu0 0.0
  %912 = vmatprep.mubr.f32.mxu0 0.0
  %913 = vmatmul.mubr.f32.gmra.mrb[0].mxu0 %v846
  %v914 = vpop.f32.mrb[0].mxu0
  %v915 = vadd.f32 0.0, %v914
  %v916 = vpop.f32.mrb[0].mxu0
  %917 = vdwg.mxu0
  %v918 = vadd.f32 %v417, %v915
  %v919 = vxor.u32 %v918, 2147483648
  %v920 = vmul.f32 %v919, 1.442695
  %v921 = vpow.pop %v920
  %v922 = vadd.f32 %v921, 1.0
  %v923 = vrcp.pop %v922
  %v924 = vmul.f32 1.0, %v923
  %v925 = vtanh.pop %v918
  %v927 = vrot.slane %v835, 6
  %v929 = vmul.f32 %v924, %v927
  %931 = vrot.lane.b32.xlu0 %v925, 64
  %v932 = vpop.permute.xlu0 %931
  %v934 = vmul.f32 %v924, %v932
  %936 = vrot.lane.b32.xlu0 %v934, 32
  %v937 = vpop.permute.xlu0 %936
  %v939 = vadd.f32 %v929, %v937
  %v940 = vtanh.pop %v939
  %942 = vrot.lane.b32.xlu0 %v940, 64
  %v943 = vpop.permute.xlu0 %942
  %v945 = vmul.f32 %v924, %v943
  %947 = vrot.lane.b32.xlu0 %v945, 32
  %v948 = vpop.permute.xlu0 %947
  %v949 = vsel %vm338, %v948, 0
  %951 = vmatprep.subr.mxu0 0.0
  %952 = vmatpush1.msra.mxu0 %v420
  %953 = vmatprep.subr.mxu0 0.0
  %954 = vmatpush1.msra.mxu0 %v421
  %955 = vmatprep.subr.mxu0 0.0
  %956 = vmatpush1.msra.mxu0 %v422
  %957 = vmatprep.subr.mxu0 0.0
  %958 = vmatpush1.msra.mxu0 %v423
  %959 = vmatprep.subr.mxu0 0.0
  %960 = vmatpush1.msra.mxu0 0.0
  %961 = vmatprep.subr.mxu0 0.0
  %962 = vmatpush1.msra.mxu0 0.0
  %963 = vmatprep.subr.mxu0 0.0
  %964 = vmatpush1.msra.mxu0 0.0
  %965 = vmatprep.subr.mxu0 0.0
  %966 = vmatpush1.msra.mxu0 0.0
  %967 = vmatprep.subr.mxu0 0.0
  %968 = vmatpush1.msra.mxu0 0.0
  %969 = vmatprep.subr.mxu0 0.0
  %970 = vmatpush1.msra.mxu0 0.0
  %971 = vmatprep.subr.mxu0 0.0
  %972 = vmatpush1.msra.mxu0 0.0
  %973 = vmatprep.subr.mxu0 0.0
  %974 = vmatpush1.msra.mxu0 0.0
  %975 = vmatprep.subr.mxu0 0.0
  %976 = vmatpush1.msra.mxu0 0.0
  %977 = vmatprep.subr.mxu0 0.0
  %978 = vmatpush1.msra.mxu0 0.0
  %979 = vmatprep.subr.mxu0 0.0
  %980 = vmatpush1.msra.mxu0 0.0
  %981 = vmatprep.subr.mxu0 0.0
  %982 = vmatpush1.msra.mxu0 0.0
  %983 = vmatprep.subr.mxu0 0.0
  %984 = vmatpush1.msra.mxu0 0.0
  %985 = vmatprep.subr.mxu0 0.0
  %986 = vmatpush1.msra.mxu0 0.0
  %987 = vmatprep.subr.mxu0 0.0
  %988 = vmatpush1.msra.mxu0 0.0
  %989 = vmatprep.subr.mxu0 0.0
  %990 = vmatpush1.msra.mxu0 0.0
  %991 = vmatprep.subr.mxu0 0.0
  %992 = vmatpush1.msra.mxu0 0.0
  %993 = vmatprep.subr.mxu0 0.0
  %994 = vmatpush1.msra.mxu0 0.0
  %995 = vmatprep.subr.mxu0 0.0
  %996 = vmatpush1.msra.mxu0 0.0
  %997 = vmatprep.subr.mxu0 0.0
  %998 = vmatpush1.msra.mxu0 0.0
  %999 = vmatprep.subr.mxu0 0.0
  %1000 = vmatpush1.msra.mxu0 0.0
  %1001 = vmatprep.subr.mxu0 0.0
  %1002 = vmatpush1.msra.mxu0 0.0
  %1003 = vmatprep.subr.mxu0 0.0
  %1004 = vmatpush1.msra.mxu0 0.0
  %1005 = vmatprep.subr.mxu0 0.0
  %1006 = vmatpush1.msra.mxu0 0.0
  %1007 = vmatprep.subr.mxu0 0.0
  %1008 = vmatpush1.msra.mxu0 0.0
  %1009 = vmatprep.subr.mxu0 0.0
  %1010 = vmatpush1.msra.mxu0 0.0
  %1011 = vmatprep.subr.mxu0 0.0
  %1012 = vmatpush1.msra.mxu0 0.0
  %1013 = vmatprep.subr.mxu0 0.0
  %1014 = vmatpush1.msra.mxu0 0.0
  %1015 = vmatprep.mubr.f32.mxu0 0.0
  %1016 = vmatmul.mubr.f32.gmra.mrb[0].mxu0 %v949
  %v1017 = vpop.f32.mrb[0].mxu0
  %v1018 = vadd.f32 0.0, %v1017
  %v1019 = vpop.f32.mrb[0].mxu0
  %1020 = vdwg.mxu0
  %v1022 = vrot.slane %v1018, 6
  %v1024 = vadd.f32 %v417, %v1022
  %v1025 = vxor.u32 %v1024, 2147483648
  %v1026 = vmul.f32 %v1025, 1.442695
  %v1027 = vpow.pop %v1026
  %v1028 = vadd.f32 %v1027, 1.0
  %v1029 = vrcp.pop %v1028
  %v1030 = vmul.f32 1.0, %v1029
  %v1031 = vtanh.pop %v1024
  %v1033 = vrot.slane %v939, 6
  %v1035 = vmul.f32 %v1030, %v1033
  %1037 = vrot.lane.b32.xlu0 %v1031, 64
  %v1038 = vpop.permute.xlu0 %1037
  %v1040 = vmul.f32 %v1030, %v1038
  %1042 = vrot.lane.b32.xlu0 %v1040, 32
  %v1043 = vpop.permute.xlu0 %1042
  %v1045 = vadd.f32 %v1035, %v1043
  %v1046 = vtanh.pop %v1045
  %1048 = vrot.lane.b32.xlu0 %v1046, 64
  %v1049 = vpop.permute.xlu0 %1048
  %v1051 = vmul.f32 %v1030, %v1049
  %v1053 = vrot.slane %v1051, 2
  %1054 = vrot.lane.b32.xlu0 %v1053, 32
  %v1055 = vpop.permute.xlu0 %1054
  %v1056 = vsel %vm338, %v1055, 0
  %1058 = vmatprep.subr.mxu0 0.0
  %1059 = vmatpush1.msra.mxu0 %v420
  %1060 = vmatprep.subr.mxu0 0.0
  %1061 = vmatpush1.msra.mxu0 %v421
  %1062 = vmatprep.subr.mxu0 0.0
  %1063 = vmatpush1.msra.mxu0 %v422
  %1064 = vmatprep.subr.mxu0 0.0
  %1065 = vmatpush1.msra.mxu0 %v423
  %1066 = vmatprep.subr.mxu0 0.0
  %1067 = vmatpush1.msra.mxu0 0.0
  %1068 = vmatprep.subr.mxu0 0.0
  %1069 = vmatpush1.msra.mxu0 0.0
  %1070 = vmatprep.subr.mxu0 0.0
  %1071 = vmatpush1.msra.mxu0 0.0
  %1072 = vmatprep.subr.mxu0 0.0
  %1073 = vmatpush1.msra.mxu0 0.0
  %1074 = vmatprep.subr.mxu0 0.0
  %1075 = vmatpush1.msra.mxu0 0.0
  %1076 = vmatprep.subr.mxu0 0.0
  %1077 = vmatpush1.msra.mxu0 0.0
  %1078 = vmatprep.subr.mxu0 0.0
  %1079 = vmatpush1.msra.mxu0 0.0
  %1080 = vmatprep.subr.mxu0 0.0
  %1081 = vmatpush1.msra.mxu0 0.0
  %1082 = vmatprep.subr.mxu0 0.0
  %1083 = vmatpush1.msra.mxu0 0.0
  %1084 = vmatprep.subr.mxu0 0.0
  %1085 = vmatpush1.msra.mxu0 0.0
  %1086 = vmatprep.subr.mxu0 0.0
  %1087 = vmatpush1.msra.mxu0 0.0
  %1088 = vmatprep.subr.mxu0 0.0
  %1089 = vmatpush1.msra.mxu0 0.0
  %1090 = vmatprep.subr.mxu0 0.0
  %1091 = vmatpush1.msra.mxu0 0.0
  %1092 = vmatprep.subr.mxu0 0.0
  %1093 = vmatpush1.msra.mxu0 0.0
  %1094 = vmatprep.subr.mxu0 0.0
  %1095 = vmatpush1.msra.mxu0 0.0
  %1096 = vmatprep.subr.mxu0 0.0
  %1097 = vmatpush1.msra.mxu0 0.0
  %1098 = vmatprep.subr.mxu0 0.0
  %1099 = vmatpush1.msra.mxu0 0.0
  %1100 = vmatprep.subr.mxu0 0.0
  %1101 = vmatpush1.msra.mxu0 0.0
  %1102 = vmatprep.subr.mxu0 0.0
  %1103 = vmatpush1.msra.mxu0 0.0
  %1104 = vmatprep.subr.mxu0 0.0
  %1105 = vmatpush1.msra.mxu0 0.0
  %1106 = vmatprep.subr.mxu0 0.0
  %1107 = vmatpush1.msra.mxu0 0.0
  %1108 = vmatprep.subr.mxu0 0.0
  %1109 = vmatpush1.msra.mxu0 0.0
  %1110 = vmatprep.subr.mxu0 0.0
  %1111 = vmatpush1.msra.mxu0 0.0
  %1112 = vmatprep.subr.mxu0 0.0
  %1113 = vmatpush1.msra.mxu0 0.0
  %1114 = vmatprep.subr.mxu0 0.0
  %1115 = vmatpush1.msra.mxu0 0.0
  %1116 = vmatprep.subr.mxu0 0.0
  %1117 = vmatpush1.msra.mxu0 0.0
  %1118 = vmatprep.subr.mxu0 0.0
  %1119 = vmatpush1.msra.mxu0 0.0
  %1120 = vmatprep.subr.mxu0 0.0
  %1121 = vmatpush1.msra.mxu0 0.0
  %1122 = vmatprep.mubr.f32.mxu0 0.0
  %1123 = vmatmul.mubr.f32.gmra.mrb[0].mxu0 %v1056
  %v1124 = vpop.f32.mrb[0].mxu0
  %v1125 = vadd.f32 0.0, %v1124
  %v1126 = vpop.f32.mrb[0].mxu0
  %1127 = vdwg.mxu0
  %v1129 = vrot.slane %v1125, 4
  %v1131 = vadd.f32 %v417, %v1129
  %v1132 = vxor.u32 %v1131, 2147483648
  %v1133 = vmul.f32 %v1132, 1.442695
  %v1134 = vpow.pop %v1133
  %v1135 = vadd.f32 %v1134, 1.0
  %v1136 = vrcp.pop %v1135
  %v1137 = vmul.f32 1.0, %v1136
  %v1138 = vtanh.pop %v1131
  %v1140 = vrot.slane %v1045, 6
  %v1142 = vmul.f32 %v1137, %v1140
  %1144 = vrot.lane.b32.xlu0 %v1138, 64
  %v1145 = vpop.permute.xlu0 %1144
  %v1147 = vmul.f32 %v1137, %v1145
  %1149 = vrot.lane.b32.xlu0 %v1147, 32
  %v1150 = vpop.permute.xlu0 %1149
  %v1152 = vadd.f32 %v1142, %v1150
  %v1153 = vtanh.pop %v1152
  %1155 = vrot.lane.b32.xlu0 %v1153, 64
  %v1156 = vpop.permute.xlu0 %1155
  %v1158 = vmul.f32 %v1137, %v1156
  %v1160 = vrot.slane %v1158, 4
  %1161 = vrot.lane.b32.xlu0 %v1160, 32
  %v1162 = vpop.permute.xlu0 %1161
  %v1163 = vsel %vm338, %v1162, 0
  %1165 = vmatprep.subr.mxu0 0.0
  %1166 = vmatpush1.msra.mxu0 %v420
  %1167 = vmatprep.subr.mxu0 0.0
  %1168 = vmatpush1.msra.mxu0 %v421
  %1169 = vmatprep.subr.mxu0 0.0
  %1170 = vmatpush1.msra.mxu0 %v422
  %1171 = vmatprep.subr.mxu0 0.0
  %1172 = vmatpush1.msra.mxu0 %v423
  %1173 = vmatprep.subr.mxu0 0.0
  %1174 = vmatpush1.msra.mxu0 0.0
  %1175 = vmatprep.subr.mxu0 0.0
  %1176 = vmatpush1.msra.mxu0 0.0
  %1177 = vmatprep.subr.mxu0 0.0
  %1178 = vmatpush1.msra.mxu0 0.0
  %1179 = vmatprep.subr.mxu0 0.0
  %1180 = vmatpush1.msra.mxu0 0.0
  %1181 = vmatprep.subr.mxu0 0.0
  %1182 = vmatpush1.msra.mxu0 0.0
  %1183 = vmatprep.subr.mxu0 0.0
  %1184 = vmatpush1.msra.mxu0 0.0
  %1185 = vmatprep.subr.mxu0 0.0
  %1186 = vmatpush1.msra.mxu0 0.0
  %1187 = vmatprep.subr.mxu0 0.0
  %1188 = vmatpush1.msra.mxu0 0.0
  %1189 = vmatprep.subr.mxu0 0.0
  %1190 = vmatpush1.msra.mxu0 0.0
  %1191 = vmatprep.subr.mxu0 0.0
  %1192 = vmatpush1.msra.mxu0 0.0
  %1193 = vmatprep.subr.mxu0 0.0
  %1194 = vmatpush1.msra.mxu0 0.0
  %1195 = vmatprep.subr.mxu0 0.0
  %1196 = vmatpush1.msra.mxu0 0.0
  %1197 = vmatprep.subr.mxu0 0.0
  %1198 = vmatpush1.msra.mxu0 0.0
  %1199 = vmatprep.subr.mxu0 0.0
  %1200 = vmatpush1.msra.mxu0 0.0
  %1201 = vmatprep.subr.mxu0 0.0
  %1202 = vmatpush1.msra.mxu0 0.0
  %1203 = vmatprep.subr.mxu0 0.0
  %1204 = vmatpush1.msra.mxu0 0.0
  %1205 = vmatprep.subr.mxu0 0.0
  %1206 = vmatpush1.msra.mxu0 0.0
  %1207 = vmatprep.subr.mxu0 0.0
  %1208 = vmatpush1.msra.mxu0 0.0
  %1209 = vmatprep.subr.mxu0 0.0
  %1210 = vmatpush1.msra.mxu0 0.0
  %1211 = vmatprep.subr.mxu0 0.0
  %1212 = vmatpush1.msra.mxu0 0.0
  %1213 = vmatprep.subr.mxu0 0.0
  %1214 = vmatpush1.msra.mxu0 0.0
  %1215 = vmatprep.subr.mxu0 0.0
  %1216 = vmatpush1.msra.mxu0 0.0
  %1217 = vmatprep.subr.mxu0 0.0
  %1218 = vmatpush1.msra.mxu0 0.0
  %1219 = vmatprep.subr.mxu0 0.0
  %1220 = vmatpush1.msra.mxu0 0.0
  %1221 = vmatprep.subr.mxu0 0.0
  %1222 = vmatpush1.msra.mxu0 0.0
  %1223 = vmatprep.subr.mxu0 0.0
  %1224 = vmatpush1.msra.mxu0 0.0
  %1225 = vmatprep.subr.mxu0 0.0
  %1226 = vmatpush1.msra.mxu0 0.0
  %1227 = vmatprep.subr.mxu0 0.0
  %1228 = vmatpush1.msra.mxu0 0.0
  %1229 = vmatprep.mubr.f32.mxu0 0.0
  %1230 = vmatmul.mubr.f32.gmra.mrb[0].mxu0 %v1163
  %v1231 = vpop.f32.mrb[0].mxu0
  %v1232 = vadd.f32 0.0, %v1231
  %v1233 = vpop.f32.mrb[0].mxu0
  %1234 = vdwg.mxu0
  %v1236 = vrot.slane %v1232, 2
  %v1238 = vadd.f32 %v417, %v1236
  %v1239 = vxor.u32 %v1238, 2147483648
  %v1240 = vmul.f32 %v1239, 1.442695
  %v1241 = vpow.pop %v1240
  %v1242 = vadd.f32 %v1241, 1.0
  %v1243 = vrcp.pop %v1242
  %v1244 = vmul.f32 1.0, %v1243
  %v1245 = vtanh.pop %v1238
  %v1247 = vrot.slane %v1152, 6
  %v1249 = vmul.f32 %v1244, %v1247
  %1251 = vrot.lane.b32.xlu0 %v1245, 64
  %v1252 = vpop.permute.xlu0 %1251
  %v1254 = vmul.f32 %v1244, %v1252
  %1256 = vrot.lane.b32.xlu0 %v1254, 32
  %v1257 = vpop.permute.xlu0 %1256
  %v1259 = vadd.f32 %v1249, %v1257
  %v1260 = vtanh.pop %v1259
  %1262 = vrot.lane.b32.xlu0 %v1260, 64
  %v1263 = vpop.permute.xlu0 %1262
  %v1265 = vmul.f32 %v1244, %v1263
  %vm1266 = vcmask 1041408
  %v1267 = vsel %vm1266, %v521, %v627
  %vm1268 = vcmask 1043456
  %v1269 = vsel %vm1268, %v1267, %v734
  %vm1270 = vcmask 1045504
  %v1271 = vsel %vm1270, %v1269, %v841
  %v1272 = vsel %vm1266, %v945, %v1051
  %v1273 = vsel %vm1268, %v1272, %v1158
  %v1274 = vsel %vm1270, %v1273, %v1265
  %v1275 = vld [vmem:[%s10] sm:$0xff]
  %v1276 = vld [vmem:[%s10 + $0x8] sm:$0xff]
  %v1277 = vld [vmem:[%s10 + $0x10] sm:$0xff]
  %v1278 = vld [vmem:[%s10 + $0x18] sm:$0xff]
  %v1279 = vld [vmem:[%s11] sm:$0xff]
  %v1280 = vld [vmem:[%s11 + $0x8] sm:$0xff]
  %v1281 = vld [vmem:[%s11 + $0x10] sm:$0xff]
  %v1282 = vld [vmem:[%s11 + $0x18] sm:$0xff]
  %v1283 = vld [vmem:[%s11 + $0x20] sm:$0xff]
  %v1284 = vld [vmem:[%s11 + $0x28] sm:$0xff]
  %v1285 = vld [vmem:[%s11 + $0x30] sm:$0xff]
  %v1286 = vld [vmem:[%s11 + $0x38] sm:$0xff]
  %v1288 = vsel %vm223, %v44, 0
  %v1291 = vsel %vm223, %v45, 0
  %1293 = vmatprep.subr.mxu0 0.0
  %1294 = vmatpush1.msra.mxu0 %v1279
  %1295 = vmatprep.subr.mxu0 0.0
  %1296 = vmatpush1.msra.mxu0 %v1280
  %1297 = vmatprep.subr.mxu0 0.0
  %1298 = vmatpush1.msra.mxu0 %v1281
  %1299 = vmatprep.subr.mxu0 0.0
  %1300 = vmatpush1.msra.mxu0 %v1282
  %1301 = vmatprep.subr.mxu0 0.0
  %1302 = vmatpush1.msra.mxu0 %v1283
  %1303 = vmatprep.subr.mxu0 0.0
  %1304 = vmatpush1.msra.mxu0 %v1284
  %1305 = vmatprep.subr.mxu0 0.0
  %1306 = vmatpush1.msra.mxu0 %v1285
  %1307 = vmatprep.subr.mxu0 0.0
  %1308 = vmatpush1.msra.mxu0 %v1286
  %1309 = vmatprep.subr.mxu0 0.0
  %1310 = vmatpush1.msra.mxu0 0.0
  %1311 = vmatprep.subr.mxu0 0.0
  %1312 = vmatpush1.msra.mxu0 0.0
  %1313 = vmatprep.subr.mxu0 0.0
  %1314 = vmatpush1.msra.mxu0 0.0
  %1315 = vmatprep.subr.mxu0 0.0
  %1316 = vmatpush1.msra.mxu0 0.0
  %1317 = vmatprep.subr.mxu0 0.0
  %1318 = vmatpush1.msra.mxu0 0.0
  %1319 = vmatprep.subr.mxu0 0.0
  %1320 = vmatpush1.msra.mxu0 0.0
  %1321 = vmatprep.subr.mxu0 0.0
  %1322 = vmatpush1.msra.mxu0 0.0
  %1323 = vmatprep.subr.mxu0 0.0
  %1324 = vmatpush1.msra.mxu0 0.0
  %1325 = vmatprep.subr.mxu0 0.0
  %1326 = vmatpush1.msra.mxu0 0.0
  %1327 = vmatprep.subr.mxu0 0.0
  %1328 = vmatpush1.msra.mxu0 0.0
  %1329 = vmatprep.subr.mxu0 0.0
  %1330 = vmatpush1.msra.mxu0 0.0
  %1331 = vmatprep.subr.mxu0 0.0
  %1332 = vmatpush1.msra.mxu0 0.0
  %1333 = vmatprep.subr.mxu0 0.0
  %1334 = vmatpush1.msra.mxu0 0.0
  %1335 = vmatprep.subr.mxu0 0.0
  %1336 = vmatpush1.msra.mxu0 0.0
  %1337 = vmatprep.subr.mxu0 0.0
  %1338 = vmatpush1.msra.mxu0 0.0
  %1339 = vmatprep.subr.mxu0 0.0
  %1340 = vmatpush1.msra.mxu0 0.0
  %1341 = vmatprep.subr.mxu0 0.0
  %1342 = vmatpush1.msra.mxu0 0.0
  %1343 = vmatprep.subr.mxu0 0.0
  %1344 = vmatpush1.msra.mxu0 0.0
  %1345 = vmatprep.subr.mxu0 0.0
  %1346 = vmatpush1.msra.mxu0 0.0
  %1347 = vmatprep.subr.mxu0 0.0
  %1348 = vmatpush1.msra.mxu0 0.0
  %1349 = vmatprep.subr.mxu0 0.0
  %1350 = vmatpush1.msra.mxu0 0.0
  %1351 = vmatprep.subr.mxu0 0.0
  %1352 = vmatpush1.msra.mxu0 0.0
  %1353 = vmatprep.subr.mxu0 0.0
  %1354 = vmatpush1.msra.mxu0 0.0
  %1355 = vmatprep.subr.mxu0 0.0
  %1356 = vmatpush1.msra.mxu0 0.0
  %1357 = vmatprep.mubr.f32.mxu0 0.0
  %1358 = vmatmul.mubr.f32.gmra.mrb[0].mxu0 %v1288
  %v1359 = vpop.f32.mrb[0].mxu0
  %v1360 = vadd.f32 0.0, %v1359
  %v1361 = vpop.f32.mrb[0].mxu0
  %1362 = vmatprep.mubr.f32.mxu0 0.0
  %1363 = vmatmul.mubr.f32.gmra.mrb[0].mxu0 %v1291
  %v1364 = vpop.f32.mrb[0].mxu0
  %v1365 = vadd.f32 0.0, %v1364
  %v1366 = vpop.f32.mrb[0].mxu0
  %1367 = vdwg.mxu0
  %1370 = vrot.lane.b32.xlu0 %v1271, 32
  %v1371 = vpop.permute.xlu0 %1370
  %1372 = vrot.lane.b32.xlu0 %v1274, 32
  %v1373 = vpop.permute.xlu0 %1372
  %v1374 = vsel %vm338, %v1371, 0
  %v1376 = vsel %vm338, %v1373, 0
  %1378 = vmatprep.subr.mxu0 0.0
  %1379 = vmatpush1.msra.mxu0 %v1275
  %1380 = vmatprep.subr.mxu0 0.0
  %1381 = vmatpush1.msra.mxu0 %v1276
  %1382 = vmatprep.subr.mxu0 0.0
  %1383 = vmatpush1.msra.mxu0 %v1277
  %1384 = vmatprep.subr.mxu0 0.0
  %1385 = vmatpush1.msra.mxu0 %v1278
  %1386 = vmatprep.subr.mxu0 0.0
  %1387 = vmatpush1.msra.mxu0 0.0
  %1388 = vmatprep.subr.mxu0 0.0
  %1389 = vmatpush1.msra.mxu0 0.0
  %1390 = vmatprep.subr.mxu0 0.0
  %1391 = vmatpush1.msra.mxu0 0.0
  %1392 = vmatprep.subr.mxu0 0.0
  %1393 = vmatpush1.msra.mxu0 0.0
  %1394 = vmatprep.subr.mxu0 0.0
  %1395 = vmatpush1.msra.mxu0 0.0
  %1396 = vmatprep.subr.mxu0 0.0
  %1397 = vmatpush1.msra.mxu0 0.0
  %1398 = vmatprep.subr.mxu0 0.0
  %1399 = vmatpush1.msra.mxu0 0.0
  %1400 = vmatprep.subr.mxu0 0.0
  %1401 = vmatpush1.msra.mxu0 0.0
  %1402 = vmatprep.subr.mxu0 0.0
  %1403 = vmatpush1.msra.mxu0 0.0
  %1404 = vmatprep.subr.mxu0 0.0
  %1405 = vmatpush1.msra.mxu0 0.0
  %1406 = vmatprep.subr.mxu0 0.0
  %1407 = vmatpush1.msra.mxu0 0.0
  %1408 = vmatprep.subr.mxu0 0.0
  %1409 = vmatpush1.msra.mxu0 0.0
  %1410 = vmatprep.subr.mxu0 0.0
  %1411 = vmatpush1.msra.mxu0 0.0
  %1412 = vmatprep.subr.mxu0 0.0
  %1413 = vmatpush1.msra.mxu0 0.0
  %1414 = vmatprep.subr.mxu0 0.0
  %1415 = vmatpush1.msra.mxu0 0.0
  %1416 = vmatprep.subr.mxu0 0.0
  %1417 = vmatpush1.msra.mxu0 0.0
  %1418 = vmatprep.subr.mxu0 0.0
  %1419 = vmatpush1.msra.mxu0 0.0
  %1420 = vmatprep.subr.mxu0 0.0
  %1421 = vmatpush1.msra.mxu0 0.0
  %1422 = vmatprep.subr.mxu0 0.0
  %1423 = vmatpush1.msra.mxu0 0.0
  %1424 = vmatprep.subr.mxu0 0.0
  %1425 = vmatpush1.msra.mxu0 0.0
  %1426 = vmatprep.subr.mxu0 0.0
  %1427 = vmatpush1.msra.mxu0 0.0
  %1428 = vmatprep.subr.mxu0 0.0
  %1429 = vmatpush1.msra.mxu0 0.0
  %1430 = vmatprep.subr.mxu0 0.0
  %1431 = vmatpush1.msra.mxu0 0.0
  %1432 = vmatprep.subr.mxu0 0.0
  %1433 = vmatpush1.msra.mxu0 0.0
  %1434 = vmatprep.subr.mxu0 0.0
  %1435 = vmatpush1.msra.mxu0 0.0
  %1436 = vmatprep.subr.mxu0 0.0
  %1437 = vmatpush1.msra.mxu0 0.0
  %1438 = vmatprep.subr.mxu0 0.0
  %1439 = vmatpush1.msra.mxu0 0.0
  %1440 = vmatprep.subr.mxu0 0.0
  %1441 = vmatpush1.msra.mxu0 0.0
  %1442 = vmatprep.mubr.f32.mxu0 0.0
  %1443 = vmatmul.mubr.f32.gmra.mrb[0].mxu0 %v1374
  %v1444 = vpop.f32.mrb[0].mxu0
  %v1445 = vadd.f32 %v1360, %v1444
  %v1446 = vpop.f32.mrb[0].mxu0
  %1447 = vmatprep.mubr.f32.mxu0 0.0
  %1448 = vmatmul.mubr.f32.gmra.mrb[0].mxu0 %v1376
  %v1449 = vpop.f32.mrb[0].mxu0
  %v1450 = vadd.f32 %v1365, %v1449
  %v1451 = vpop.f32.mrb[0].mxu0
  %1452 = vdwg.mxu0
  %v1453 = vld [vmem:[%s12] sm:$0x1]
  %v1455 = vlaneseq
  %v1456 = vshrl.u32 %v1455, 7
  %v1457 = vsub.s32 0, %v1456
  %v1458 = vrot.slane %v1453, %v1457
  %v1460 = vadd.f32 %v1445, %v1458
  %v1461 = vadd.f32 %v1450, %v1458
  %v1462 = vlaneseq
  %v1463 = vand.u32 %v1462, 127
  %vm1464 = vcmp.eq.s32.totalorder %v1463, 0
  %vm1465 = vcmp.lt.s32.totalorder %v315, 2
  %vm1466 = vcmp.lt.s32.totalorder %v316, 2
  %vm1467 = vcmp.eq.s32.totalorder %v1463, 3
  %v1468 = vsel %vm1465, 1, 0
  %v1469 = vsel %vm1466, 1, 0
  %vm1470 = vcmp.eq.s32.totalorder %v1468, 1
  %vm1471 = vcmp.eq.s32.totalorder %v1469, 1
  %vm1472 = vmand %vm1470, %vm1467
  %vm1473 = vmand %vm1471, %vm1467
  %vm1474 = vmor %vm1464, %vm1472
  %vm1475 = vmor %vm1464, %vm1473
  %v1476 = vsel %vm1474, -1e+30, %v1460
  %v1477 = vsel %vm1475, -1e+30, %v1461
  %v1478 = vld [vmem:[%s3] sm:$0xff]
  %v1479 = vld [vmem:[%s3 + $0x8] sm:$0xff]
  %vm1480 = vcmp.gt.f32.partialorder %v1478, 0.0
  %vm1481 = vcmp.gt.f32.partialorder %v1479, 0.0
  %v1482 = vsel %vm1480, 1, 0
  %v1483 = vsel %vm1481, 1, 0
  %1484 = vset.pattern.permute.xlu0 0
  %1485 = vperm.xlu0 %1484, %v1482
  %v1486 = vpop.permute.xlu0 %1485
  %1487 = vset.pattern.permute.xlu0 0
  %1488 = vperm.xlu0 %1487, %v1483
  %v1489 = vpop.permute.xlu0 %1488
  %vm1490 = vcmp.eq.s32.totalorder %v1486, 1
  %vm1491 = vcmp.eq.s32.totalorder %v1489, 1
  %v1492 = vsel %vm1490, %v1476, 0.0
  %v1493 = vsel %vm1491, %v1477, 0.0
  %v1495 = vrot.slane %v1492, 2
  %1496 = vrot.lane.b32.xlu0 %v1495, 16
  %v1497 = vpop.permute.xlu0 %1496
  %v1499 = vrot.slane %v1492, 4
  %1500 = vrot.lane.b32.xlu0 %v1499, 32
  %v1501 = vpop.permute.xlu0 %1500
  %v1503 = vrot.slane %v1492, 6
  %1504 = vrot.lane.b32.xlu0 %v1503, 48
  %v1505 = vpop.permute.xlu0 %1504
  %1508 = vrot.lane.b32.xlu0 %v1493, 64
  %v1509 = vpop.permute.xlu0 %1508
  %v1511 = vrot.slane %v1493, 2
  %1512 = vrot.lane.b32.xlu0 %v1511, 80
  %v1513 = vpop.permute.xlu0 %1512
  %v1515 = vrot.slane %v1493, 4
  %1516 = vrot.lane.b32.xlu0 %v1515, 96
  %v1517 = vpop.permute.xlu0 %1516
  %v1519 = vrot.slane %v1493, 6
  %1520 = vrot.lane.b32.xlu0 %v1519, 112
  %v1521 = vpop.permute.xlu0 %1520
  %v1523 = vsel %vm48, %v1492, %v1497
  %v1524 = vsel %vm338, %v1523, %v1501
  %vm1525 = vcmask 392192
  %v1526 = vsel %vm1525, %v1524, %v1505
  %v1527 = vsel %vm223, %v1526, %v1509
  %vm1528 = vcmask 654336
  %v1529 = vsel %vm1528, %v1527, %v1513
  %vm1530 = vcmask 785408
  %v1531 = vsel %vm1530, %v1529, %v1517
  %vm1532 = vcmask 916480
  %v1533 = vsel %vm1532, %v1531, %v1521
  %1534 = vst [vmem:[%s13] sm:$0x3] %v1533
  // Predicated region
  $region54: #{decode_forward.1} parent=0 // pred_check
    _
  $region55: #{decode_forward.1} parent=0 // pred_check_branch
    %1536 = sbr.rel (0) target = $region57
  $region56: #{decode_forward.1} parent=0 // pred_region
    _
  $region57: #{decode_forward.1} parent=0 // pred_fallthru
    _
  // Predicated region
  $region58: #{decode_forward.1} parent=0 // pred_check
    _
  $region59: #{decode_forward.1} parent=0 // pred_check_branch
    %1538 = sbr.rel (0) target = $region61
  $region60: #{decode_forward.1} parent=0 // pred_region
    _
  $region61: #{decode_forward.1} parent=0 // pred_fallthru
    _

</llo_original>
